<compile_context>
chip_gen: v7x
topology: tpu7x:2x2x1
jax: 0.10.0
libtpu: 0.0.40
codegen_flags: <defaults>
</compile_context>

<pallas_src>
import functools

import jax
import jax.numpy as jnp
import numpy as np
from jax import lax
from jax.experimental import pallas as pl
from jax.experimental.pallas import tpu as pltpu


def _round_up(x, m):
    return ((x + m - 1) // m) * m


# ----------------------------------------------------------------------------
# Kernel: one grid step == (batch b, query-chunk t).
#   x_ref  : (C, N)    input for batch b (resident across t)
#   w1/b1  : fused once-per-batch projection rows [pos_k | ch_q | ch_k | ch_v]
#   w2/b2  : fused per-chunk projection rows       [pos_q | pos_v]
#   wo/bo  : channel-attention output 1x1 conv (C, C8), (C, 1)
#   o_ref  : (C, N)    accumulator output for batch b
#   k_scr  : (C8, N)   VMEM scratch holding the position-attention key
# ----------------------------------------------------------------------------
def _attention_kernel(x_ref, w1_ref, b1_ref, w2_ref, b2_ref, wo_ref, bo_ref,
                      o_ref, k_scr, *, C, C8, P8, TQ):
    f32 = jnp.float32
    t = pl.program_id(1)

    # ---------------- once per batch element (t == 0) ----------------
    @pl.when(t == 0)
    def _():
        x = x_ref[...]                                                   # (C, N)
        proj = jnp.dot(w1_ref[...], x, preferred_element_type=f32) + b1_ref[...]
        k_scr[...] = proj[0:C8]                                          # pos key  (C8, N)
        qc = proj[P8:P8 + C8]                                            # ch query (C8, N)
        kc = proj[2 * P8:2 * P8 + C8]                                    # ch key   (C8, N)
        vc = proj[3 * P8:3 * P8 + C8]                                    # ch value (C8, N)

        # channel attention: energy[a, b] = sum_n qc[a, n] * kc[b, n]
        e = lax.dot_general(qc, kc, (((1,), (1,)), ((), ())),
                            preferred_element_type=f32)                  # (C8, C8)
        e = e - jnp.max(e, axis=-1, keepdims=True)
        pe = jnp.exp(e)
        attn_c = pe * pl.reciprocal(jnp.sum(pe, axis=-1, keepdims=True), approx=True)

        # fold conv_out into the attention: out = (wo @ attn_c) @ vc + bo
        w_eff = jnp.dot(wo_ref[...], attn_c, preferred_element_type=f32)  # (C, C8)
        ch_out = jnp.dot(w_eff, vc, preferred_element_type=f32) + bo_ref[...]
        o_ref[...] = ch_out.astype(o_ref.dtype)

    # ---------------- position attention, one chunk of softmax rows ----------------
    start = t * TQ
    if TQ % 128 == 0:
        start = pl.multiple_of(start, 128)
    xc = x_ref[:, pl.ds(start, TQ)]                                      # (C, TQ)
    proj2 = jnp.dot(w2_ref[...], xc, preferred_element_type=f32) + b2_ref[...]
    q = proj2[0:C8]                                                      # (C8, TQ)
    v = proj2[P8:P8 + C]                                                 # (C,  TQ)

    # energy[j, m] = sum_a q[a, j] * k[a, m]
    e = lax.dot_general(q, k_scr[...], (((0,), (0,)), ((), ())),
                        preferred_element_type=f32)                      # (TQ, N)
    e = e - jnp.max(e, axis=-1, keepdims=True)
    pe = jnp.exp(e)
    attn = pe * pl.reciprocal(jnp.sum(pe, axis=-1, keepdims=True), approx=True)

    # out[c, m] += sum_{j in chunk} v[c, j] * attn[j, m]   (natural MXU matmul)
    o_ref[...] = o_ref[...] + jnp.dot(v, attn, preferred_element_type=f32).astype(o_ref.dtype)


# ----------------------------------------------------------------------------
# Wrapper: NCHW in / NCHW out.  Parameters follow PyTorch Conv2d conventions
# (weight (Cout, Cin) for 1x1 convs, bias (Cout,)).
# ----------------------------------------------------------------------------
@functools.partial(jax.jit, static_argnames=("tq",))
def attention_module(x_nchw, params, *, tq=None):
    B, C, H, W = x_nchw.shape
    N = H * W
    C8 = C // 8
    assert C8 >= 1, "in_channels must be >= 8 (module uses in_channels // 8)"
    P8 = _round_up(C8, 8)
    PC = _round_up(C, 8)

    # Pick the query-chunk size (rows of the NxN attention live at once).
    if tq is None:
        if N % 128 != 0:
            tq = N
        else:
            tq = 128
            while tq * 2 <= min(N, 512) and N % (tq * 2) == 0:
                tq *= 2
    if not (N % tq == 0 and (tq == N or tq % 128 == 0)):
        raise ValueError(f"tq={tq} must divide N={N} and be a multiple of 128 (or == N)")
    n_chunks = N // tq

    f32 = jnp.float32

    def pw(w, rows):  # zero-pad weight rows to a sublane-aligned segment
        w = jnp.asarray(w, f32)
        return jnp.pad(w, ((0, rows - w.shape[0]), (0, 0)))

    def pb(b, rows):
        b = jnp.asarray(b, f32).reshape(-1, 1)
        return jnp.pad(b, ((0, rows - b.shape[0]), (0, 0)))

    # Fused projection weights (native PyTorch (Cout, Cin) layout, no transpose).
    w1 = jnp.concatenate([pw(params["pos_wk"], P8), pw(params["ch_wq"], P8),
                          pw(params["ch_wk"], P8), pw(params["ch_wv"], P8)], axis=0)
    b1 = jnp.concatenate([pb(params["pos_bk"], P8), pb(params["ch_bq"], P8),
                          pb(params["ch_bk"], P8), pb(params["ch_bv"], P8)], axis=0)
    w2 = jnp.concatenate([pw(params["pos_wq"], P8), pw(params["pos_wv"], PC)], axis=0)
    b2 = jnp.concatenate([pb(params["pos_bq"], P8), pb(params["pos_bv"], PC)], axis=0)
    wo = jnp.asarray(params["ch_wo"], f32)                 # (C, C8)
    bo = jnp.asarray(params["ch_bo"], f32).reshape(-1, 1)  # (C, 1)

    # NCHW -> (B, C, N): pure reshape, no transpose (channels=sublanes, tokens=lanes).
    x = x_nchw.reshape(B, C, N).astype(f32)

    kernel = functools.partial(_attention_kernel, C=C, C8=C8, P8=P8, TQ=tq)
    const = lambda arr: pl.BlockSpec(arr.shape, lambda b, t: (0,) * arr.ndim)

    out = pl.pallas_call(
        kernel,
        out_shape=jax.ShapeDtypeStruct((B, C, N), f32),
        grid_spec=pltpu.PrefetchScalarGridSpec(
            num_scalar_prefetch=0,
            grid=(B, n_chunks),
            in_specs=[pl.BlockSpec((None, C, N), lambda b, t: (b, 0, 0)),
                      const(w1), const(b1), const(w2), const(b2),
                      const(wo), const(bo)],
            out_specs=pl.BlockSpec((None, C, N), lambda b, t: (b, 0, 0)),
            scratch_shapes=[pltpu.VMEM((C8, N), f32)],
        ),
        compiler_params=pltpu.CompilerParams(
            dimension_semantics=("parallel", "arbitrary"),
            vmem_limit_bytes=32 * 1024 * 1024,
        ),
    )(x, w1, b1, w2, b2, wo, bo)

    return out.reshape(B, C, H, W)


# ----------------------------------------------------------------------------
# Pure-JAX reference (mirrors the PyTorch module, NCHW) for verification.
# ----------------------------------------------------------------------------
def _conv1x1(x, w, b):
    return jnp.einsum("oc,bchw->bohw", w, x) + b[None, :, None, None]


def _reference(x, p):
    B, C, H, W = x.shape
    N = H * W

    # Position attention
    q = _conv1x1(x, p["pos_wq"], p["pos_bq"]).reshape(B, -1, N).transpose(0, 2, 1)  # (B,N,C8)
    k = _conv1x1(x, p["pos_wk"], p["pos_bk"]).reshape(B, -1, N)                     # (B,C8,N)
    v = _conv1x1(x, p["pos_wv"], p["pos_bv"]).reshape(B, -1, N)                     # (B,C,N)
    attn = jax.nn.softmax(jnp.einsum("bnc,bcm->bnm", q, k), axis=-1)                # (B,N,N)
    pos_out = jnp.einsum("bcn,bnm->bcm", v, attn).reshape(B, C, H, W)

    # Channel attention
    pq = _conv1x1(x, p["ch_wq"], p["ch_bq"]).reshape(B, -1, N)                      # (B,C8,N)
    pk = _conv1x1(x, p["ch_wk"], p["ch_bk"]).reshape(B, -1, N).transpose(0, 2, 1)   # (B,N,C8)
    pv = _conv1x1(x, p["ch_wv"], p["ch_bv"]).reshape(B, -1, N)                      # (B,C8,N)
    energy = jnp.einsum("ban,bnc->bac", pq, pk)                                     # (B,C8,C8)
    cattn = jax.nn.softmax(energy, axis=-1)
    ch = jnp.einsum("bac,bcn->ban", cattn, pv).reshape(B, -1, H, W)                 # (B,C8,H,W)
    ch_out = _conv1x1(ch, p["ch_wo"], p["ch_bo"])                                   # (B,C,H,W)

    return pos_out + ch_out


def _init_params(key, C):
    C8 = C // 8
    ks = jax.random.split(key, 14)
    n = lambda k, shp: (jax.random.normal(k, shp, jnp.float32) * 0.1)
    return {
        # PositionAttention
        "pos_wq": n(ks[0], (C8, C)), "pos_bq": n(ks[1], (C8,)),
        "pos_wk": n(ks[2], (C8, C)), "pos_bk": n(ks[3], (C8,)),
        "pos_wv": n(ks[4], (C, C)),  "pos_bv": n(ks[5], (C,)),
        # ChannelAttention
        "ch_wq": n(ks[6], (C8, C)),  "ch_bq": n(ks[7], (C8,)),
        "ch_wk": n(ks[8], (C8, C)),  "ch_bk": n(ks[9], (C8,)),
        "ch_wv": n(ks[10], (C8, C)), "ch_bv": n(ks[11], (C8,)),
        "ch_wo": n(ks[12], (C, C8)), "ch_bo": n(ks[13], (C,)),
    }


if __name__ == "__main__":
    B, C, H, W = 2, 32, 16, 16      # C must be >= 8 (module projects to C // 8)
    key = jax.random.PRNGKey(0)
    kx, kp = jax.random.split(key)

    x = jax.random.normal(kx, (B, C, H, W), jnp.float32)
    params = _init_params(kp, C)

    # tq=128 -> 2 query chunks at N=256, exercising the accumulation path.
    out = attention_module(x, params, tq=128)
    out = jax.block_until_ready(out)

    ref = _reference(x, params)
    assert out.shape == (B, C, H, W)
    np.testing.assert_allclose(np.asarray(out), np.asarray(ref), rtol=5e-3, atol=5e-3)

    print("KERNEL_OK")
</pallas_src>

<mosaic_0001>
module attributes {stable_mosaic.version = 11 : i64} {
  func.func @_attention_kernel(%arg0: i32, %arg1: i32, %arg2: memref<1x32x256xf32, #tpu.memory_space<vmem>>, %arg3: memref<32x32xf32, #tpu.memory_space<vmem>>, %arg4: memref<32x1xf32, #tpu.memory_space<vmem>>, %arg5: memref<40x32xf32, #tpu.memory_space<vmem>>, %arg6: memref<40x1xf32, #tpu.memory_space<vmem>>, %arg7: memref<32x4xf32, #tpu.memory_space<vmem>>, %arg8: memref<32x1xf32, #tpu.memory_space<vmem>>, %arg9: memref<1x32x256xf32, #tpu.memory_space<vmem>>, %arg10: memref<4x256xf32, #tpu.memory_space<vmem>>) attributes {dimension_semantics = [#tpu.dimension_semantics<parallel>, #tpu.dimension_semantics<arbitrary>], iteration_bounds = array<i64: 2, 2>, scalar_prefetch = 0 : i64, scratch_operands = 1 : i64, tpu.core_type = #tpu.core_type<tc>, window_params = [{transform_indices = @transform_0, window_bounds = array<i64: 1, 32, 256>}, {pipeline_mode = #tpu.pipeline_mode<synchronous>, transform_indices = @transform_1, window_bounds = array<i64: 32, 32>}, {pipeline_mode = #tpu.pipeline_mode<synchronous>, transform_indices = @transform_2, window_bounds = array<i64: 32, 1>}, {pipeline_mode = #tpu.pipeline_mode<synchronous>, transform_indices = @transform_3, window_bounds = array<i64: 40, 32>}, {pipeline_mode = #tpu.pipeline_mode<synchronous>, transform_indices = @transform_4, window_bounds = array<i64: 40, 1>}, {pipeline_mode = #tpu.pipeline_mode<synchronous>, transform_indices = @transform_5, window_bounds = array<i64: 32, 4>}, {pipeline_mode = #tpu.pipeline_mode<synchronous>, transform_indices = @transform_6, window_bounds = array<i64: 32, 1>}, {transform_indices = @transform_7, window_bounds = array<i64: 1, 32, 256>}]} {
    %c0_i32 = arith.constant 0 : i32
    %0 = arith.cmpi eq, %arg1, %c0_i32 : i32
    %1 = arith.extui %0 : i1 to i32
    %c0_i32_0 = arith.constant 0 : i32
    %2 = arith.cmpi ne, %1, %c0_i32_0 : i32
    scf.if %2 {
      %c0_18 = arith.constant 0 : index
      %c0_19 = arith.constant 0 : index
      %c0_20 = arith.constant 0 : index
      %34 = vector.load %arg2[%c0_18, %c0_19, %c0_20] : memref<1x32x256xf32, #tpu.memory_space<vmem>>, vector<1x32x256xf32>
      %35 = vector.shape_cast %34 : vector<1x32x256xf32> to vector<32x256xf32>
      %c0_21 = arith.constant 0 : index
      %c0_22 = arith.constant 0 : index
      %36 = vector.load %arg3[%c0_21, %c0_22] : memref<32x32xf32, #tpu.memory_space<vmem>>, vector<32x32xf32>
      %cst_23 = arith.constant dense<0.000000e+00> : vector<32x256xf32>
      %37 = tpu.matmul %36, %35, %cst_23 {dimension_numbers = #tpu.dot_dimension_numbers<[1], [0], [0], [1], [0, 0, 1, 1], [], []>} : vector<32x32xf32>, vector<32x256xf32>, vector<32x256xf32> -> vector<32x256xf32>
      %c0_24 = arith.constant 0 : index
      %c0_25 = arith.constant 0 : index
      %38 = vector.load %arg4[%c0_24, %c0_25] : memref<32x1xf32, #tpu.memory_space<vmem>>, vector<32x1xf32>
      %39 = vector.broadcast %38 : vector<32x1xf32> to vector<32x256xf32>
      %40 = arith.addf %37, %39 : vector<32x256xf32>
      %41 = vector.extract_strided_slice %40 {offsets = [0, 0], sizes = [4, 256], strides = [1, 1]} : vector<32x256xf32> to vector<4x256xf32>
      %c0_26 = arith.constant 0 : index
      %c0_27 = arith.constant 0 : index
      %42 = vector.load %arg10[%c0_26, %c0_27] : memref<4x256xf32, #tpu.memory_space<vmem>>, vector<4x256xf32>
      tpu.vector_store %arg10[%c0_26, %c0_27], %41 {strides = array<i32>} : memref<4x256xf32, #tpu.memory_space<vmem>>, vector<4x256xf32>,
      %43 = vector.extract_strided_slice %40 {offsets = [8, 0], sizes = [4, 256], strides = [1, 1]} : vector<32x256xf32> to vector<4x256xf32>
      %44 = vector.extract_strided_slice %40 {offsets = [16, 0], sizes = [4, 256], strides = [1, 1]} : vector<32x256xf32> to vector<4x256xf32>
      %45 = vector.extract_strided_slice %40 {offsets = [24, 0], sizes = [4, 256], strides = [1, 1]} : vector<32x256xf32> to vector<4x256xf32>
      %cst_28 = arith.constant dense<0.000000e+00> : vector<4x4xf32>
      %46 = tpu.matmul %43, %44, %cst_28 {dimension_numbers = #tpu.dot_dimension_numbers<[1], [1], [0], [0], [0, 0, 1, 0], [], []>} : vector<4x256xf32>, vector<4x256xf32>, vector<4x4xf32> -> vector<4x4xf32>
      %cst_29 = arith.constant dense<0xFF800000> : vector<4xf32>
      %47 = vector.multi_reduction <maximumf>, %46, %cst_29 [1] : vector<4x4xf32> to vector<4xf32>
      %48 = vector.shape_cast %47 : vector<4xf32> to vector<4x1xf32>
      %49 = vector.broadcast %48 : vector<4x1xf32> to vector<4x4xf32>
      %50 = arith.subf %46, %49 : vector<4x4xf32>
      %51 = math.exp %50 : vector<4x4xf32>
      %cst_30 = arith.constant dense<0.000000e+00> : vector<4xf32>
      %52 = vector.multi_reduction <add>, %51, %cst_30 [1] : vector<4x4xf32> to vector<4xf32>
      %53 = vector.shape_cast %52 : vector<4xf32> to vector<4x1xf32>
      %54 = tpu.reciprocal %53 {approx = true} : vector<4x1xf32> -> vector<4x1xf32>
      %55 = vector.broadcast %54 : vector<4x1xf32> to vector<4x4xf32>
      %56 = arith.mulf %51, %55 : vector<4x4xf32>
      %c0_31 = arith.constant 0 : index
      %c0_32 = arith.constant 0 : index
      %57 = vector.load %arg7[%c0_31, %c0_32] : memref<32x4xf32, #tpu.memory_space<vmem>>, vector<32x4xf32>
      %cst_33 = arith.constant dense<0.000000e+00> : vector<32x4xf32>
      %58 = tpu.matmul %57, %56, %cst_33 {dimension_numbers = #tpu.dot_dimension_numbers<[1], [0], [0], [1], [0, 0, 1, 1], [], []>} : vector<32x4xf32>, vector<4x4xf32>, vector<32x4xf32> -> vector<32x4xf32>
      %cst_34 = arith.constant dense<0.000000e+00> : vector<32x256xf32>
      %59 = tpu.matmul %58, %45, %cst_34 {dimension_numbers = #tpu.dot_dimension_numbers<[1], [0], [0], [1], [0, 0, 1, 1], [], []>} : vector<32x4xf32>, vector<4x256xf32>, vector<32x256xf32> -> vector<32x256xf32>
      %c0_35 = arith.constant 0 : index
      %c0_36 = arith.constant 0 : index
      %60 = vector.load %arg8[%c0_35, %c0_36] : memref<32x1xf32, #tpu.memory_space<vmem>>, vector<32x1xf32>
      %61 = vector.broadcast %60 : vector<32x1xf32> to vector<32x256xf32>
      %62 = arith.addf %59, %61 : vector<32x256xf32>
      %c0_37 = arith.constant 0 : index
      %c0_38 = arith.constant 0 : index
      %c0_39 = arith.constant 0 : index
      %63 = vector.load %arg9[%c0_37, %c0_38, %c0_39] : memref<1x32x256xf32, #tpu.memory_space<vmem>>, vector<1x32x256xf32>
      %64 = vector.shape_cast %63 : vector<1x32x256xf32> to vector<32x256xf32>
      %65 = vector.shape_cast %62 : vector<32x256xf32> to vector<1x32x256xf32>
      tpu.vector_store %arg9[%c0_37, %c0_38, %c0_39], %65 {strides = array<i32>} : memref<1x32x256xf32, #tpu.memory_space<vmem>>, vector<1x32x256xf32>,
    } else {
    }
    %c128_i32 = arith.constant 128 : i32
    %3 = arith.muli %arg1, %c128_i32 : i32
    %4 = tpu.assume_multiple %3, 128 : i32
    %c0 = arith.constant 0 : index
    %c0_1 = arith.constant 0 : index
    %5 = arith.index_cast %4 : i32 to index
    %6 = vector.load %arg2[%c0, %c0_1, %5] : memref<1x32x256xf32, #tpu.memory_space<vmem>>, vector<1x32x128xf32>
    %7 = vector.shape_cast %6 : vector<1x32x128xf32> to vector<32x128xf32>
    %c0_2 = arith.constant 0 : index
    %c0_3 = arith.constant 0 : index
    %8 = vector.load %arg5[%c0_2, %c0_3] : memref<40x32xf32, #tpu.memory_space<vmem>>, vector<40x32xf32>
    %cst = arith.constant dense<0.000000e+00> : vector<40x128xf32>
    %9 = tpu.matmul %8, %7, %cst {dimension_numbers = #tpu.dot_dimension_numbers<[1], [0], [0], [1], [0, 0, 1, 1], [], []>} : vector<40x32xf32>, vector<32x128xf32>, vector<40x128xf32> -> vector<40x128xf32>
    %c0_4 = arith.constant 0 : index
    %c0_5 = arith.constant 0 : index
    %10 = vector.load %arg6[%c0_4, %c0_5] : memref<40x1xf32, #tpu.memory_space<vmem>>, vector<40x1xf32>
    %11 = vector.broadcast %10 : vector<40x1xf32> to vector<40x128xf32>
    %12 = arith.addf %9, %11 : vector<40x128xf32>
    %13 = vector.extract_strided_slice %12 {offsets = [0, 0], sizes = [4, 128], strides = [1, 1]} : vector<40x128xf32> to vector<4x128xf32>
    %14 = vector.extract_strided_slice %12 {offsets = [8, 0], sizes = [32, 128], strides = [1, 1]} : vector<40x128xf32> to vector<32x128xf32>
    %c0_6 = arith.constant 0 : index
    %c0_7 = arith.constant 0 : index
    %15 = vector.load %arg10[%c0_6, %c0_7] : memref<4x256xf32, #tpu.memory_space<vmem>>, vector<4x256xf32>
    %cst_8 = arith.constant dense<0.000000e+00> : vector<128x256xf32>
    %16 = tpu.matmul %13, %15, %cst_8 {dimension_numbers = #tpu.dot_dimension_numbers<[0], [0], [1], [1], [0, 1, 1, 1], [], []>} : vector<4x128xf32>, vector<4x256xf32>, vector<128x256xf32> -> vector<128x256xf32>
    %cst_9 = arith.constant dense<0xFF800000> : vector<128xf32>
    %17 = vector.multi_reduction <maximumf>, %16, %cst_9 [1] : vector<128x256xf32> to vector<128xf32>
    %18 = vector.shape_cast %17 : vector<128xf32> to vector<128x1xf32>
    %19 = vector.broadcast %18 : vector<128x1xf32> to vector<128x256xf32>
    %20 = arith.subf %16, %19 : vector<128x256xf32>
    %21 = math.exp %20 : vector<128x256xf32>
    %cst_10 = arith.constant dense<0.000000e+00> : vector<128xf32>
    %22 = vector.multi_reduction <add>, %21, %cst_10 [1] : vector<128x256xf32> to vector<128xf32>
    %23 = vector.shape_cast %22 : vector<128xf32> to vector<128x1xf32>
    %24 = tpu.reciprocal %23 {approx = true} : vector<128x1xf32> -> vector<128x1xf32>
    %25 = vector.broadcast %24 : vector<128x1xf32> to vector<128x256xf32>
    %26 = arith.mulf %21, %25 : vector<128x256xf32>
    %c0_11 = arith.constant 0 : index
    %c0_12 = arith.constant 0 : index
    %c0_13 = arith.constant 0 : index
    %27 = vector.load %arg9[%c0_11, %c0_12, %c0_13] : memref<1x32x256xf32, #tpu.memory_space<vmem>>, vector<1x32x256xf32>
    %28 = vector.shape_cast %27 : vector<1x32x256xf32> to vector<32x256xf32>
    %cst_14 = arith.constant dense<0.000000e+00> : vector<32x256xf32>
    %29 = tpu.matmul %14, %26, %cst_14 {dimension_numbers = #tpu.dot_dimension_numbers<[1], [0], [0], [1], [0, 0, 1, 1], [], []>} : vector<32x128xf32>, vector<128x256xf32>, vector<32x256xf32> -> vector<32x256xf32>
    %30 = arith.addf %28, %29 : vector<32x256xf32>
    %c0_15 = arith.constant 0 : index
    %c0_16 = arith.constant 0 : index
    %c0_17 = arith.constant 0 : index
    %31 = vector.load %arg9[%c0_15, %c0_16, %c0_17] : memref<1x32x256xf32, #tpu.memory_space<vmem>>, vector<1x32x256xf32>
    %32 = vector.shape_cast %31 : vector<1x32x256xf32> to vector<32x256xf32>
    %33 = vector.shape_cast %30 : vector<32x256xf32> to vector<1x32x256xf32>
    tpu.vector_store %arg9[%c0_15, %c0_16, %c0_17], %33 {strides = array<i32>} : memref<1x32x256xf32, #tpu.memory_space<vmem>>, vector<1x32x256xf32>,
    return
  }
  func.func @transform_0(%arg0: i32, %arg1: i32) -> (i32, i32, i32) {
    %c0_i32 = arith.constant 0 : i32
    %c0_i32_0 = arith.constant 0 : i32
    %c0_i32_1 = arith.constant 0 : i32
    return %arg0, %c0_i32, %c0_i32_0 : i32, i32, i32
  }
  func.func @transform_1(%arg0: i32, %arg1: i32) -> (i32, i32) {
    %c0_i32 = arith.constant 0 : i32
    %c0_i32_0 = arith.constant 0 : i32
    %c0_i32_1 = arith.constant 0 : i32
    return %c0_i32, %c0_i32_0 : i32, i32
  }
  func.func @transform_2(%arg0: i32, %arg1: i32) -> (i32, i32) {
    %c0_i32 = arith.constant 0 : i32
    %c0_i32_0 = arith.constant 0 : i32
    %c0_i32_1 = arith.constant 0 : i32
    return %c0_i32, %c0_i32_0 : i32, i32
  }
  func.func @transform_3(%arg0: i32, %arg1: i32) -> (i32, i32) {
    %c0_i32 = arith.constant 0 : i32
    %c0_i32_0 = arith.constant 0 : i32
    %c0_i32_1 = arith.constant 0 : i32
    return %c0_i32, %c0_i32_0 : i32, i32
  }
  func.func @transform_4(%arg0: i32, %arg1: i32) -> (i32, i32) {
    %c0_i32 = arith.constant 0 : i32
    %c0_i32_0 = arith.constant 0 : i32
    %c0_i32_1 = arith.constant 0 : i32
    return %c0_i32, %c0_i32_0 : i32, i32
  }
  func.func @transform_5(%arg0: i32, %arg1: i32) -> (i32, i32) {
    %c0_i32 = arith.constant 0 : i32
    %c0_i32_0 = arith.constant 0 : i32
    %c0_i32_1 = arith.constant 0 : i32
    return %c0_i32, %c0_i32_0 : i32, i32
  }
  func.func @transform_6(%arg0: i32, %arg1: i32) -> (i32, i32) {
    %c0_i32 = arith.constant 0 : i32
    %c0_i32_0 = arith.constant 0 : i32
    %c0_i32_1 = arith.constant 0 : i32
    return %c0_i32, %c0_i32_0 : i32, i32
  }
  func.func @transform_7(%arg0: i32, %arg1: i32) -> (i32, i32, i32) {
    %c0_i32 = arith.constant 0 : i32
    %c0_i32_0 = arith.constant 0 : i32
    %c0_i32_1 = arith.constant 0 : i32
    return %arg0, %c0_i32, %c0_i32_0 : i32, i32, i32
  }
}

</mosaic_0001>

<llo_original>
// kernel: attention_module.1
$region0: #{attention_module.1}
  #allocation0 [shape = 'u32[]', space=smem, size = 0x4, offset = 0x4, fixed_abs, tag = 'smem constant byte address 0x4 - core index']
  #allocation1 [shape = 'u32[144,128]{1,0:T(1,128)}', space=vmem, size = 0x12000, scoped, tag = 'internal scratch']
  #allocation2 [shape = 'f32[4,256]{1,0:T(4,128)}', space=vmem, size = 0x1000, scoped, tag = 'scratch operand']
  %s0 = inlined_call_operand.vmem [shape: f32[2,32,256], index: 0, kind: input, shape index: {}]
  %s1 = inlined_call_operand.vmem [shape: f32[32,32], index: 1, kind: input, shape index: {}]
  %s2 = inlined_call_operand.vmem [shape: f32[32,1], index: 2, kind: input, shape index: {}]
  %s3 = inlined_call_operand.vmem [shape: f32[40,32], index: 3, kind: input, shape index: {}]
  %s4 = inlined_call_operand.vmem [shape: f32[40,1], index: 4, kind: input, shape index: {}]
  %s5 = inlined_call_operand.vmem [shape: f32[32,4], index: 5, kind: input, shape index: {}]
  %s6 = inlined_call_operand.vmem [shape: f32[32,1], index: 6, kind: input, shape index: {}]
  %s7 = inlined_call_operand.vmem [shape: f32[2,32,256], index: 7, kind: output, shape index: {}]
  %s8 = sld [smem:[#allocation0]]
  $region65: #{attention_module.1} parent=0
    _
  %s10 = ssub.s32 1, %s8
  %s11 = scalar_select 0, %s10, %s8
  loop: start=0, step=1, limit=6
  $region2: #{attention_module.1} parent=0 // loop_pre_header
    _
  $region3: #{attention_module.1} parent=0 // loop_header
    %s13 = sphi 0, %s17
    %p14 = scmp.ge.s32.totalorder %s13, 6
    %s20 = sphi 0, %s32
    %s21 = sphi 0, %s28
    %s22 = sphi 0, %s20
    %s23 = sphi 0, %s21
    %s24 = sphi 0, %s22
    %s25 = sphi 0, %s23
    %s35 = sphi 0, %s37
    %s38 = sphi 0, %s35
    %s39 = sphi 0, %s38
    %s55 = sphi 0, %s39
    %s59 = sphi 0, %s59
    %s61 = sphi 0, %s59
    %s62 = sphi 0, %s61
    %s76 = sphi 0, %s62
    %s80 = sphi 0, %s80
    %s82 = sphi 0, %s80
    %s83 = sphi 0, %s82
    %s97 = sphi 0, %s83
    %s101 = sphi 0, %s101
    %s103 = sphi 0, %s101
    %s104 = sphi 0, %s103
    %s118 = sphi 0, %s104
    %s122 = sphi 0, %s122
    %s124 = sphi 0, %s122
    %s125 = sphi 0, %s124
    %s139 = sphi 0, %s125
    %s143 = sphi 0, %s143
    %s145 = sphi 0, %s143
    %s146 = sphi 0, %s145
    %s160 = sphi 0, %s146
    %s164 = sphi 0, %s164
    %s166 = sphi 0, %s164
    %s167 = sphi 0, %s166
    %s181 = sphi 0, %s167
    %s187 = sphi 0, %s189
    %s190 = sphi 0, %s187
    %s191 = sphi 0, %s190
    %s207 = sphi 0, %s191
  $region4: #{attention_module.1} parent=0 // loop_header_branch
    %16 = sbr.rel (%p14) target = $region8
  $region5: #{attention_module.1} parent=0 // loop_body
    %s18 = ssub.s32 %s13, 1
    %s19 = ssub.s32 %s13, 2
    %s26 = sadd.s32 1, %s21
    %p27 = scmp.ge.s32.totalorder %s26, 2
    %s28 = scalar_select %p27, 0, %s26
    %s29 = sadd.s32 1, %s20
    %s30 = scalar_select %p27, %s29, %s20
    %p31 = scmp.ge.s32.totalorder %s30, 2
    %s32 = scalar_select %p31, 0, %s30
    %s33 = ssub.s32 %s20, %s32
    %p34 = scmp.eq.s32.totalorder %s33, 0
    %s36 = sadd.s32 %s35, 1
    %s37 = scalar_select %p34, %s35, %s36
    %p40 = pneg %p34
    %p41 = scmp.eq.s32.totalorder %s13, 3
    %p42 = por %p40, %p41
    %p43 = scmp.ne.s32.totalorder %s35, %s38
    %p44 = scmp.eq.s32.totalorder %s13, 0
    %p45 = por %p43, %p44
    %p46 = scmp.ne.s32.totalorder %s35, %s38
    %p47 = scmp.eq.s32.totalorder %s18, 3
    %p48 = por %p46, %p47
    %p49 = scmp.ne.s32.totalorder %s38, %s39
    %p50 = scmp.eq.s32.totalorder %s18, 0
    %p51 = por %p49, %p50
    %p52 = scmp.ne.s32.totalorder %s38, %s39
    %p53 = scmp.eq.s32.totalorder %s19, 3
    %p54 = por %p52, %p53
    %p56 = scmp.ne.s32.totalorder %s39, %s55
    %p57 = scmp.eq.s32.totalorder %s19, 0
    %p58 = por %p56, %p57
    %s60 = sadd.s32 %s59, 1
    %p63 = scmp.eq.s32.totalorder %s13, 3
    %p64 = scmp.ne.s32.totalorder %s59, %s61
    %p65 = scmp.eq.s32.totalorder %s13, 0
    %p66 = por %p64, %p65
    %p67 = scmp.ne.s32.totalorder %s59, %s61
    %p68 = scmp.eq.s32.totalorder %s18, 3
    %p69 = por %p67, %p68
    %p70 = scmp.ne.s32.totalorder %s61, %s62
    %p71 = scmp.eq.s32.totalorder %s18, 0
    %p72 = por %p70, %p71
    %p73 = scmp.ne.s32.totalorder %s61, %s62
    %p74 = scmp.eq.s32.totalorder %s19, 3
    %p75 = por %p73, %p74
    %p77 = scmp.ne.s32.totalorder %s62, %s76
    %p78 = scmp.eq.s32.totalorder %s19, 0
    %p79 = por %p77, %p78
    %s81 = sadd.s32 %s80, 1
    %p84 = scmp.eq.s32.totalorder %s13, 3
    %p85 = scmp.ne.s32.totalorder %s80, %s82
    %p86 = scmp.eq.s32.totalorder %s13, 0
    %p87 = por %p85, %p86
    %p88 = scmp.ne.s32.totalorder %s80, %s82
    %p89 = scmp.eq.s32.totalorder %s18, 3
    %p90 = por %p88, %p89
    %p91 = scmp.ne.s32.totalorder %s82, %s83
    %p92 = scmp.eq.s32.totalorder %s18, 0
    %p93 = por %p91, %p92
    %p94 = scmp.ne.s32.totalorder %s82, %s83
    %p95 = scmp.eq.s32.totalorder %s19, 3
    %p96 = por %p94, %p95
    %p98 = scmp.ne.s32.totalorder %s83, %s97
    %p99 = scmp.eq.s32.totalorder %s19, 0
    %p100 = por %p98, %p99
    %s102 = sadd.s32 %s101, 1
    %p105 = scmp.eq.s32.totalorder %s13, 3
    %p106 = scmp.ne.s32.totalorder %s101, %s103
    %p107 = scmp.eq.s32.totalorder %s13, 0
    %p108 = por %p106, %p107
    %p109 = scmp.ne.s32.totalorder %s101, %s103
    %p110 = scmp.eq.s32.totalorder %s18, 3
    %p111 = por %p109, %p110
    %p112 = scmp.ne.s32.totalorder %s103, %s104
    %p113 = scmp.eq.s32.totalorder %s18, 0
    %p114 = por %p112, %p113
    %p115 = scmp.ne.s32.totalorder %s103, %s104
    %p116 = scmp.eq.s32.totalorder %s19, 3
    %p117 = por %p115, %p116
    %p119 = scmp.ne.s32.totalorder %s104, %s118
    %p120 = scmp.eq.s32.totalorder %s19, 0
    %p121 = por %p119, %p120
    %s123 = sadd.s32 %s122, 1
    %p126 = scmp.eq.s32.totalorder %s13, 3
    %p127 = scmp.ne.s32.totalorder %s122, %s124
    %p128 = scmp.eq.s32.totalorder %s13, 0
    %p129 = por %p127, %p128
    %p130 = scmp.ne.s32.totalorder %s122, %s124
    %p131 = scmp.eq.s32.totalorder %s18, 3
    %p132 = por %p130, %p131
    %p133 = scmp.ne.s32.totalorder %s124, %s125
    %p134 = scmp.eq.s32.totalorder %s18, 0
    %p135 = por %p133, %p134
    %p136 = scmp.ne.s32.totalorder %s124, %s125
    %p137 = scmp.eq.s32.totalorder %s19, 3
    %p138 = por %p136, %p137
    %p140 = scmp.ne.s32.totalorder %s125, %s139
    %p141 = scmp.eq.s32.totalorder %s19, 0
    %p142 = por %p140, %p141
    %s144 = sadd.s32 %s143, 1
    %p147 = scmp.eq.s32.totalorder %s13, 3
    %p148 = scmp.ne.s32.totalorder %s143, %s145
    %p149 = scmp.eq.s32.totalorder %s13, 0
    %p150 = por %p148, %p149
    %p151 = scmp.ne.s32.totalorder %s143, %s145
    %p152 = scmp.eq.s32.totalorder %s18, 3
    %p153 = por %p151, %p152
    %p154 = scmp.ne.s32.totalorder %s145, %s146
    %p155 = scmp.eq.s32.totalorder %s18, 0
    %p156 = por %p154, %p155
    %p157 = scmp.ne.s32.totalorder %s145, %s146
    %p158 = scmp.eq.s32.totalorder %s19, 3
    %p159 = por %p157, %p158
    %p161 = scmp.ne.s32.totalorder %s146, %s160
    %p162 = scmp.eq.s32.totalorder %s19, 0
    %p163 = por %p161, %p162
    %s165 = sadd.s32 %s164, 1
    %p168 = scmp.eq.s32.totalorder %s13, 3
    %p169 = scmp.ne.s32.totalorder %s164, %s166
    %p170 = scmp.eq.s32.totalorder %s13, 0
    %p171 = por %p169, %p170
    %p172 = scmp.ne.s32.totalorder %s164, %s166
    %p173 = scmp.eq.s32.totalorder %s18, 3
    %p174 = por %p172, %p173
    %p175 = scmp.ne.s32.totalorder %s166, %s167
    %p176 = scmp.eq.s32.totalorder %s18, 0
    %p177 = por %p175, %p176
    %p178 = scmp.ne.s32.totalorder %s166, %s167
    %p179 = scmp.eq.s32.totalorder %s19, 3
    %p180 = por %p178, %p179
    %p182 = scmp.ne.s32.totalorder %s167, %s181
    %p183 = scmp.eq.s32.totalorder %s19, 0
    %p184 = por %p182, %p183
    %s185 = ssub.s32 %s20, %s32
    %p186 = scmp.eq.s32.totalorder %s185, 0
    %s188 = sadd.s32 %s187, 1
    %s189 = scalar_select %p186, %s187, %s188
    %p192 = pneg %p186
    %p193 = scmp.eq.s32.totalorder %s13, 3
    %p194 = por %p192, %p193
    %p195 = scmp.ne.s32.totalorder %s187, %s190
    %p196 = scmp.eq.s32.totalorder %s13, 0
    %p197 = por %p195, %p196
    %p198 = scmp.ne.s32.totalorder %s187, %s190
    %p199 = scmp.eq.s32.totalorder %s18, 3
    %p200 = por %p198, %p199
    %p201 = scmp.ne.s32.totalorder %s190, %s191
    %p202 = scmp.eq.s32.totalorder %s18, 0
    %p203 = por %p201, %p202
    %p204 = scmp.ne.s32.totalorder %s190, %s191
    %p205 = scmp.eq.s32.totalorder %s19, 3
    %p206 = por %p204, %p205
    %p208 = scmp.ne.s32.totalorder %s191, %s207
    %p209 = scmp.eq.s32.totalorder %s19, 0
    %p210 = por %p208, %p209
    %p211 = scmp.le.s32.totalorder 1, %s13
    %p212 = scmp.lt.s32.totalorder %s13, 5
    %p213 = pnand %p211, %p212
    %p214 = pneg %p213
    // Predicated region
    $region9: #{attention_module.1} parent=5 // pred_check
      _
    $region10: #{attention_module.1} parent=5 // pred_check_branch
      %216 = sbr.rel (%p213) target = $region12
    $region11: #{attention_module.1} parent=5 // pred_region
      %s217 = ssub.s32 %s13, 1
      // Predicated region
      $region13: #{attention_module.1} parent=11 // pred_check
        %p218 = pneg %p72
      $region14: #{attention_module.1} parent=11 // pred_check_branch
        %220 = sbr.rel (%p218) target = $region16
      $region15: #{attention_module.1} parent=11 // pred_region
        _
      $region16: #{attention_module.1} parent=11 // pred_fallthru
        _
      // Predicated region
      $region17: #{attention_module.1} parent=11 // pred_check
        %p221 = pneg %p93
      $region18: #{attention_module.1} parent=11 // pred_check_branch
        %223 = sbr.rel (%p221) target = $region20
      $region19: #{attention_module.1} parent=11 // pred_region
        _
      $region20: #{attention_module.1} parent=11 // pred_fallthru
        _
      // Predicated region
      $region21: #{attention_module.1} parent=11 // pred_check
        %p224 = pneg %p114
      $region22: #{attention_module.1} parent=11 // pred_check_branch
        %226 = sbr.rel (%p224) target = $region24
      $region23: #{attention_module.1} parent=11 // pred_region
        _
      $region24: #{attention_module.1} parent=11 // pred_fallthru
        _
      // Predicated region
      $region25: #{attention_module.1} parent=11 // pred_check
        %p227 = pneg %p135
      $region26: #{attention_module.1} parent=11 // pred_check_branch
        %229 = sbr.rel (%p227) target = $region28
      $region27: #{attention_module.1} parent=11 // pred_region
        _
      $region28: #{attention_module.1} parent=11 // pred_fallthru
        _
      // Predicated region
      $region29: #{attention_module.1} parent=11 // pred_check
        %p230 = pneg %p156
      $region30: #{attention_module.1} parent=11 // pred_check_branch
        %232 = sbr.rel (%p230) target = $region32
      $region31: #{attention_module.1} parent=11 // pred_region
        _
      $region32: #{attention_module.1} parent=11 // pred_fallthru
        _
      // Predicated region
      $region33: #{attention_module.1} parent=11 // pred_check
        %p233 = pneg %p177
      $region34: #{attention_module.1} parent=11 // pred_check_branch
        %235 = sbr.rel (%p233) target = $region36
      $region35: #{attention_module.1} parent=11 // pred_region
        _
      $region36: #{attention_module.1} parent=11 // pred_fallthru
        _
    $region12: #{attention_module.1} parent=5 // pred_fallthru
      _
    %p236 = scmp.lt.s32.totalorder %s13, 4
    // Predicated region
    $region37: #{attention_module.1} parent=5 // pred_check
      %p237 = pneg %p236
    $region38: #{attention_module.1} parent=5 // pred_check_branch
      %239 = sbr.rel (%p237) target = $region40
    $region39: #{attention_module.1} parent=5 // pred_region
      // Predicated region
      $region41: #{attention_module.1} parent=39 // pred_check
        %p240 = pneg %p45
      $region42: #{attention_module.1} parent=39 // pred_check_branch
        %242 = sbr.rel (%p240) target = $region44
      $region43: #{attention_module.1} parent=39 // pred_region
        %p243 = scmp.lt.s32.totalorder %s20, 1
        %s244 = scalar_select %p243, %s20, 1
        %s245 = smul.addr %s244, 8
        %s246 = smul.addr %s245, 8
        %s247 = scalar_lea.vmem %s0, %s246
      $region44: #{attention_module.1} parent=39 // pred_fallthru
        _
    $region40: #{attention_module.1} parent=5 // pred_fallthru
      _
    %p248 = scmp.le.s32.totalorder 1, %s13
    %p249 = scmp.lt.s32.totalorder %s13, 5
    %p250 = pnand %p248, %p249
    %p251 = pneg %p250
    // Predicated region
    $region45: #{attention_module.1} parent=5 // pred_check
      _
    $region46: #{attention_module.1} parent=5 // pred_check_branch
      %253 = sbr.rel (%p250) target = $region48
    $region47: #{attention_module.1} parent=5 // pred_region
      %s254 = ssub.s32 %s13, 1
      %p255 = scmp.lt.s32.totalorder %s22, 1
      %s256 = scalar_select %p255, %s22, 1
      %s257 = smul.addr %s256, 8
      %s258 = smul.addr %s257, 8
      %s259 = scalar_lea.vmem %s0, %s258
      %p260 = pneg %p51
      %p261 = pneg %p48
      %p262 = pneg %p72
      %p263 = pneg %p69
      %p264 = pneg %p93
      %p265 = pneg %p90
      %p266 = pneg %p114
      %p267 = pneg %p111
      %p268 = pneg %p135
      %p269 = pneg %p132
      %p270 = pneg %p156
      %p271 = pneg %p153
      %p272 = pneg %p177
      %p273 = pneg %p174
      %p274 = pneg %p203
      %p275 = pneg %p200
      %p276 = scmp.lt.s32.totalorder %s22, 1
      %s277 = scalar_select %p276, %s22, 1
      %s278 = smul.addr %s277, 8
      %s279 = smul.addr %s278, 8
      %s280 = scalar_lea.vmem %s7, %s279
      %p281 = scmp.lt.s32.totalorder %s22, 1
      %s282 = scalar_select %p281, %s22, 1
      %s283 = smul.addr %s282, 8
      %s284 = smul.addr %s283, 8
      %s285 = scalar_lea.vmem %s0, %s284
      %p286 = scmp.lt.s32.totalorder %s22, 1
      %s287 = scalar_select %p286, %s22, 1
      %s288 = smul.addr %s287, 8
      %s289 = smul.addr %s288, 8
      %s290 = scalar_lea.vmem %s7, %s289
      %p291 = scmp.eq.s32.totalorder %s23, 0
      // Predicated region
      $region49: #{attention_module.1} parent=47 // pred_check
        %p292 = pneg %p291
      $region50: #{attention_module.1} parent=47 // pred_check_branch
        %294 = sbr.rel (%p292) target = $region52
      $region51: #{attention_module.1} parent=47 // pred_region
        %v295 = vld [vmem:[%s285] sm:$0xff]
        %v296 = vld [vmem:[%s285 + $0x8] sm:$0xff]
        %v297 = vld [vmem:[%s285 + $0x10] sm:$0xff]
        %v298 = vld [vmem:[%s285 + $0x18] sm:$0xff]
        %v299 = vld [vmem:[%s285 + $0x20] sm:$0xff]
        %v300 = vld [vmem:[%s285 + $0x28] sm:$0xff]
        %v301 = vld [vmem:[%s285 + $0x30] sm:$0xff]
        %v302 = vld [vmem:[%s285 + $0x38] sm:$0xff]
        %v303 = vld [vmem:[%s1] sm:$0xff]
        %v304 = vld [vmem:[%s1 + $0x8] sm:$0xff]
        %v305 = vld [vmem:[%s1 + $0x10] sm:$0xff]
        %v306 = vld [vmem:[%s1 + $0x18] sm:$0xff]
        %v307 = vld [vmem:[%s2] sm:$0xff]
        %v308 = vld [vmem:[%s2 + $0x8] sm:$0xff]
        %v309 = vld [vmem:[%s2 + $0x10] sm:$0xff]
        %v310 = vld [vmem:[%s2 + $0x18] sm:$0xff]
        %312 = vset.pattern.permute.xlu0 0
        %313 = vperm.xlu0 %312, %v307
        %v314 = vpop.permute.xlu0 %313
        %317 = vset.pattern.permute.xlu0 0
        %318 = vperm.xlu0 %317, %v308
        %v319 = vpop.permute.xlu0 %318
        %322 = vset.pattern.permute.xlu0 0
        %323 = vperm.xlu0 %322, %v309
        %v324 = vpop.permute.xlu0 %323
        %327 = vset.pattern.permute.xlu0 0
        %328 = vperm.xlu0 %327, %v310
        %v329 = vpop.permute.xlu0 %328
        %vm331 = vcmask 261120
        %v333 = vsel %vm331, %v303, 0
        %v336 = vsel %vm331, %v304, 0
        %v339 = vsel %vm331, %v305, 0
        %v342 = vsel %vm331, %v306, 0
        %344 = vmatprep.subr.mxu0 %v296
        %345 = vmatpush1.msra.mxu0 %v295
        %346 = vmatprep.subr.mxu0 %v298
        %347 = vmatpush1.msra.mxu0 %v297
        %348 = vmatprep.subr.mxu0 %v300
        %349 = vmatpush1.msra.mxu0 %v299
        %350 = vmatprep.subr.mxu0 %v302
        %351 = vmatpush1.msra.mxu0 %v301
        %352 = vmatprep.subr.mxu0 0.0
        %353 = vmatpush1.msra.mxu0 0.0
        %354 = vmatprep.subr.mxu0 0.0
        %355 = vmatpush1.msra.mxu0 0.0
        %356 = vmatprep.subr.mxu0 0.0
        %357 = vmatpush1.msra.mxu0 0.0
        %358 = vmatprep.subr.mxu0 0.0
        %359 = vmatpush1.msra.mxu0 0.0
        %360 = vmatprep.subr.mxu0 0.0
        %361 = vmatpush1.msra.mxu0 0.0
        %362 = vmatprep.subr.mxu0 0.0
        %363 = vmatpush1.msra.mxu0 0.0
        %364 = vmatprep.subr.mxu0 0.0
        %365 = vmatpush1.msra.mxu0 0.0
        %366 = vmatprep.subr.mxu0 0.0
        %367 = vmatpush1.msra.mxu0 0.0
        %368 = vmatprep.subr.mxu0 0.0
        %369 = vmatpush1.msra.mxu0 0.0
        %370 = vmatprep.subr.mxu0 0.0
        %371 = vmatpush1.msra.mxu0 0.0
        %372 = vmatprep.subr.mxu0 0.0
        %373 = vmatpush1.msra.mxu0 0.0
        %374 = vmatprep.subr.mxu0 0.0
        %375 = vmatpush1.msra.mxu0 0.0
        %376 = vmatprep.subr.mxu0 0.0
        %377 = vmatpush1.msra.mxu0 0.0
        %378 = vmatprep.subr.mxu0 0.0
        %379 = vmatpush1.msra.mxu0 0.0
        %380 = vmatprep.subr.mxu0 0.0
        %381 = vmatpush1.msra.mxu0 0.0
        %382 = vmatprep.subr.mxu0 0.0
        %383 = vmatpush1.msra.mxu0 0.0
        %384 = vmatprep.subr.mxu0 0.0
        %385 = vmatpush1.msra.mxu0 0.0
        %386 = vmatprep.subr.mxu0 0.0
        %387 = vmatpush1.msra.mxu0 0.0
        %388 = vmatprep.subr.mxu0 0.0
        %389 = vmatpush1.msra.mxu0 0.0
        %390 = vmatprep.subr.mxu0 0.0
        %391 = vmatpush1.msra.mxu0 0.0
        %392 = vmatprep.subr.mxu0 0.0
        %393 = vmatpush1.msra.mxu0 0.0
        %394 = vmatprep.subr.mxu0 0.0
        %395 = vmatpush1.msra.mxu0 0.0
        %396 = vmatprep.subr.mxu0 0.0
        %397 = vmatpush1.msra.mxu0 0.0
        %398 = vmatprep.subr.mxu0 0.0
        %399 = vmatpush1.msra.mxu0 0.0
        %400 = vmatprep.subr.mxu0 0.0
        %401 = vmatpush1.msra.mxu0 0.0
        %402 = vmatprep.subr.mxu0 0.0
        %403 = vmatpush1.msra.mxu0 0.0
        %404 = vmatprep.subr.mxu0 0.0
        %405 = vmatpush1.msra.mxu0 0.0
        %406 = vmatprep.subr.mxu0 0.0
        %407 = vmatpush1.msra.mxu0 0.0
        %408 = vmatprep.mubr.f32.mxu0 0.0
        %409 = vmatmul.mubr.f32.gmra.mrb[0].mxu0 %v333
        %v410 = vpop.f32.mrb[0].mxu0
        %v411 = vadd.f32 %v314, %v410
        %v412 = vpop.f32.mrb[0].mxu0
        %v413 = vadd.f32 %v314, %v412
        %414 = vmatprep.mubr.f32.mxu0 0.0
        %415 = vmatmul.mubr.f32.gmra.mrb[0].mxu0 %v336
        %v416 = vpop.f32.mrb[0].mxu0
        %v417 = vadd.f32 %v319, %v416
        %v418 = vpop.f32.mrb[0].mxu0
        %v419 = vadd.f32 %v319, %v418
        %420 = vmatprep.mubr.f32.mxu0 0.0
        %421 = vmatmul.mubr.f32.gmra.mrb[0].mxu0 %v339
        %v422 = vpop.f32.mrb[0].mxu0
        %v423 = vadd.f32 %v324, %v422
        %v424 = vpop.f32.mrb[0].mxu0
        %v425 = vadd.f32 %v324, %v424
        %426 = vmatprep.mubr.f32.mxu0 0.0
        %427 = vmatmul.mubr.f32.gmra.mrb[0].mxu0 %v342
        %v428 = vpop.f32.mrb[0].mxu0
        %v429 = vadd.f32 %v329, %v428
        %v430 = vpop.f32.mrb[0].mxu0
        %v431 = vadd.f32 %v329, %v430
        %432 = vdwg.mxu0
        %v435 = vcombine.low %v411, %v413
        %437 = vst [vmem:[#allocation2] sm:$0xff] %v435
        %438 = vmatprep.subr.mxu0 %v425
        %439 = vmatpush1.xpose.msra.mxu0 %v423
        %440 = vmatprep.subr.mxu0 0.0
        %441 = vmatpush1.xpose.msra.mxu0 0.0
        %442 = vmatprep.subr.mxu0 0.0
        %443 = vmatpush1.xpose.msra.mxu0 0.0
        %444 = vmatprep.subr.mxu0 0.0
        %445 = vmatpush1.xpose.msra.mxu0 0.0
        %446 = vmatprep.subr.mxu0 0.0
        %447 = vmatpush1.xpose.msra.mxu0 0.0
        %448 = vmatprep.subr.mxu0 0.0
        %449 = vmatpush1.xpose.msra.mxu0 0.0
        %450 = vmatprep.subr.mxu0 0.0
        %451 = vmatpush1.xpose.msra.mxu0 0.0
        %452 = vmatprep.subr.mxu0 0.0
        %453 = vmatpush1.xpose.msra.mxu0 0.0
        %454 = vmatprep.subr.mxu0 0.0
        %455 = vmatpush1.xpose.msra.mxu0 0.0
        %456 = vmatprep.subr.mxu0 0.0
        %457 = vmatpush1.xpose.msra.mxu0 0.0
        %458 = vmatprep.subr.mxu0 0.0
        %459 = vmatpush1.xpose.msra.mxu0 0.0
        %460 = vmatprep.subr.mxu0 0.0
        %461 = vmatpush1.xpose.msra.mxu0 0.0
        %462 = vmatprep.subr.mxu0 0.0
        %463 = vmatpush1.xpose.msra.mxu0 0.0
        %464 = vmatprep.subr.mxu0 0.0
        %465 = vmatpush1.xpose.msra.mxu0 0.0
        %466 = vmatprep.subr.mxu0 0.0
        %467 = vmatpush1.xpose.msra.mxu0 0.0
        %468 = vmatprep.subr.mxu0 0.0
        %469 = vmatpush1.xpose.msra.mxu0 0.0
        %470 = vmatprep.subr.mxu0 0.0
        %471 = vmatpush1.xpose.msra.mxu0 0.0
        %472 = vmatprep.subr.mxu0 0.0
        %473 = vmatpush1.xpose.msra.mxu0 0.0
        %474 = vmatprep.subr.mxu0 0.0
        %475 = vmatpush1.xpose.msra.mxu0 0.0
        %476 = vmatprep.subr.mxu0 0.0
        %477 = vmatpush1.xpose.msra.mxu0 0.0
        %478 = vmatprep.subr.mxu0 0.0
        %479 = vmatpush1.xpose.msra.mxu0 0.0
        %480 = vmatprep.subr.mxu0 0.0
        %481 = vmatpush1.xpose.msra.mxu0 0.0
        %482 = vmatprep.subr.mxu0 0.0
        %483 = vmatpush1.xpose.msra.mxu0 0.0
        %484 = vmatprep.subr.mxu0 0.0
        %485 = vmatpush1.xpose.msra.mxu0 0.0
        %486 = vmatprep.subr.mxu0 0.0
        %487 = vmatpush1.xpose.msra.mxu0 0.0
        %488 = vmatprep.subr.mxu0 0.0
        %489 = vmatpush1.xpose.msra.mxu0 0.0
        %490 = vmatprep.subr.mxu0 0.0
        %491 = vmatpush1.xpose.msra.mxu0 0.0
        %492 = vmatprep.subr.mxu0 0.0
        %493 = vmatpush1.xpose.msra.mxu0 0.0
        %494 = vmatprep.subr.mxu0 0.0
        %495 = vmatpush1.xpose.msra.mxu0 0.0
        %496 = vmatprep.subr.mxu0 0.0
        %497 = vmatpush1.xpose.msra.mxu0 0.0
        %498 = vmatprep.subr.mxu0 0.0
        %499 = vmatpush1.xpose.msra.mxu0 0.0
        %500 = vmatprep.subr.mxu0 0.0
        %501 = vmatpush1.xpose.msra.mxu0 0.0
        %502 = vmatprep.mubr.f32.mxu0 %v419
        %503 = vmatmul.mubr.f32.gmra.mrb[0].mxu0 %v417
        %v504 = vpop.f32.mrb[0].mxu0
        %v505 = vadd.f32 0.0, %v504
        %v506 = vpop.f32.mrb[0].mxu0
        %507 = vdwg.mxu0
        %vm508 = vcmask 27648
        %v509 = vsel %vm508, %v505, -inf
        %510 = vmax.xlane.f32.xlu0 %v509
        %v511 = vpop.xlane.xlu0 %510
        %v512 = vsub.f32 %v505, %v511
        %v513 = vmul.f32 %v512, 1.442695
        %v514 = vpow.pop %v513
        %v515 = vsel %vm508, %v514, 0.0
        %516 = vadd.xlane.f32.xlu0 %v515
        %v517 = vpop.xlane.xlu0 %516
        %v518 = vrcp.pop %v517
        %v519 = vmul.f32 %v514, %v518
        %v520 = vld [vmem:[%s5] sm:$0xff]
        %v521 = vld [vmem:[%s5 + $0x8] sm:$0xff]
        %v522 = vld [vmem:[%s5 + $0x10] sm:$0xff]
        %v523 = vld [vmem:[%s5 + $0x18] sm:$0xff]
        %vm524 = vcmask 31744
        %v526 = vsel %vm524, %v520, 0
        %v529 = vsel %vm524, %v521, 0
        %v532 = vsel %vm524, %v522, 0
        %v535 = vsel %vm524, %v523, 0
        %vm537 = vcmask 1043456
        %v539 = vsel %vm537, %v519, 0
        %541 = vmatprep.subr.mxu0 0.0
        %542 = vmatpush1.msra.mxu0 %v539
        %543 = vmatprep.subr.mxu0 0.0
        %544 = vmatpush1.msra.mxu0 0.0
        %545 = vmatprep.subr.mxu0 0.0
        %546 = vmatpush1.msra.mxu0 0.0
        %547 = vmatprep.subr.mxu0 0.0
        %548 = vmatpush1.msra.mxu0 0.0
        %549 = vmatprep.subr.mxu0 0.0
        %550 = vmatpush1.msra.mxu0 0.0
        %551 = vmatprep.subr.mxu0 0.0
        %552 = vmatpush1.msra.mxu0 0.0
        %553 = vmatprep.subr.mxu0 0.0
        %554 = vmatpush1.msra.mxu0 0.0
        %555 = vmatprep.subr.mxu0 0.0
        %556 = vmatpush1.msra.mxu0 0.0
        %557 = vmatprep.subr.mxu0 0.0
        %558 = vmatpush1.msra.mxu0 0.0
        %559 = vmatprep.subr.mxu0 0.0
        %560 = vmatpush1.msra.mxu0 0.0
        %561 = vmatprep.subr.mxu0 0.0
        %562 = vmatpush1.msra.mxu0 0.0
        %563 = vmatprep.subr.mxu0 0.0
        %564 = vmatpush1.msra.mxu0 0.0
        %565 = vmatprep.subr.mxu0 0.0
        %566 = vmatpush1.msra.mxu0 0.0
        %567 = vmatprep.subr.mxu0 0.0
        %568 = vmatpush1.msra.mxu0 0.0
        %569 = vmatprep.subr.mxu0 0.0
        %570 = vmatpush1.msra.mxu0 0.0
        %571 = vmatprep.subr.mxu0 0.0
        %572 = vmatpush1.msra.mxu0 0.0
        %573 = vmatprep.subr.mxu0 0.0
        %574 = vmatpush1.msra.mxu0 0.0
        %575 = vmatprep.subr.mxu0 0.0
        %576 = vmatpush1.msra.mxu0 0.0
        %577 = vmatprep.subr.mxu0 0.0
        %578 = vmatpush1.msra.mxu0 0.0
        %579 = vmatprep.subr.mxu0 0.0
        %580 = vmatpush1.msra.mxu0 0.0
        %581 = vmatprep.subr.mxu0 0.0
        %582 = vmatpush1.msra.mxu0 0.0
        %583 = vmatprep.subr.mxu0 0.0
        %584 = vmatpush1.msra.mxu0 0.0
        %585 = vmatprep.subr.mxu0 0.0
        %586 = vmatpush1.msra.mxu0 0.0
        %587 = vmatprep.subr.mxu0 0.0
        %588 = vmatpush1.msra.mxu0 0.0
        %589 = vmatprep.subr.mxu0 0.0
        %590 = vmatpush1.msra.mxu0 0.0
        %591 = vmatprep.subr.mxu0 0.0
        %592 = vmatpush1.msra.mxu0 0.0
        %593 = vmatprep.subr.mxu0 0.0
        %594 = vmatpush1.msra.mxu0 0.0
        %595 = vmatprep.subr.mxu0 0.0
        %596 = vmatpush1.msra.mxu0 0.0
        %597 = vmatprep.subr.mxu0 0.0
        %598 = vmatpush1.msra.mxu0 0.0
        %599 = vmatprep.subr.mxu0 0.0
        %600 = vmatpush1.msra.mxu0 0.0
        %601 = vmatprep.subr.mxu0 0.0
        %602 = vmatpush1.msra.mxu0 0.0
        %603 = vmatprep.subr.mxu0 0.0
        %604 = vmatpush1.msra.mxu0 0.0
        %605 = vmatprep.mubr.f32.mxu0 0.0
        %606 = vmatmul.mubr.f32.gmra.mrb[0].mxu0 %v526
        %v607 = vpop.f32.mrb[0].mxu0
        %v608 = vadd.f32 0.0, %v607
        %v609 = vpop.f32.mrb[0].mxu0
        %610 = vmatprep.mubr.f32.mxu0 0.0
        %611 = vmatmul.mubr.f32.gmra.mrb[0].mxu0 %v529
        %v612 = vpop.f32.mrb[0].mxu0
        %v613 = vadd.f32 0.0, %v612
        %v614 = vpop.f32.mrb[0].mxu0
        %615 = vmatprep.mubr.f32.mxu0 0.0
        %616 = vmatmul.mubr.f32.gmra.mrb[0].mxu0 %v532
        %v617 = vpop.f32.mrb[0].mxu0
        %v618 = vadd.f32 0.0, %v617
        %v619 = vpop.f32.mrb[0].mxu0
        %620 = vmatprep.mubr.f32.mxu0 0.0
        %621 = vmatmul.mubr.f32.gmra.mrb[0].mxu0 %v535
        %v622 = vpop.f32.mrb[0].mxu0
        %v623 = vadd.f32 0.0, %v622
        %v624 = vpop.f32.mrb[0].mxu0
        %625 = vdwg.mxu0
        %v626 = vld [vmem:[%s6] sm:$0xff]
        %v627 = vld [vmem:[%s6 + $0x8] sm:$0xff]
        %v628 = vld [vmem:[%s6 + $0x10] sm:$0xff]
        %v629 = vld [vmem:[%s6 + $0x18] sm:$0xff]
        %631 = vset.pattern.permute.xlu0 0
        %632 = vperm.xlu0 %631, %v626
        %v633 = vpop.permute.xlu0 %632
        %636 = vset.pattern.permute.xlu0 0
        %637 = vperm.xlu0 %636, %v627
        %v638 = vpop.permute.xlu0 %637
        %641 = vset.pattern.permute.xlu0 0
        %642 = vperm.xlu0 %641, %v628
        %v643 = vpop.permute.xlu0 %642
        %646 = vset.pattern.permute.xlu0 0
        %647 = vperm.xlu0 %646, %v629
        %v648 = vpop.permute.xlu0 %647
        %v651 = vsel %vm524, %v608, 0
        %v654 = vsel %vm524, %v613, 0
        %v657 = vsel %vm524, %v618, 0
        %v660 = vsel %vm524, %v623, 0
        %v663 = vsel %vm537, %v429, 0
        %v666 = vsel %vm537, %v431, 0
        %668 = vmatprep.subr.mxu0 %v666
        %669 = vmatpush1.msra.mxu0 %v663
        %670 = vmatprep.subr.mxu0 0.0
        %671 = vmatpush1.msra.mxu0 0.0
        %672 = vmatprep.subr.mxu0 0.0
        %673 = vmatpush1.msra.mxu0 0.0
        %674 = vmatprep.subr.mxu0 0.0
        %675 = vmatpush1.msra.mxu0 0.0
        %676 = vmatprep.subr.mxu0 0.0
        %677 = vmatpush1.msra.mxu0 0.0
        %678 = vmatprep.subr.mxu0 0.0
        %679 = vmatpush1.msra.mxu0 0.0
        %680 = vmatprep.subr.mxu0 0.0
        %681 = vmatpush1.msra.mxu0 0.0
        %682 = vmatprep.subr.mxu0 0.0
        %683 = vmatpush1.msra.mxu0 0.0
        %684 = vmatprep.subr.mxu0 0.0
        %685 = vmatpush1.msra.mxu0 0.0
        %686 = vmatprep.subr.mxu0 0.0
        %687 = vmatpush1.msra.mxu0 0.0
        %688 = vmatprep.subr.mxu0 0.0
        %689 = vmatpush1.msra.mxu0 0.0
        %690 = vmatprep.subr.mxu0 0.0
        %691 = vmatpush1.msra.mxu0 0.0
        %692 = vmatprep.subr.mxu0 0.0
        %693 = vmatpush1.msra.mxu0 0.0
        %694 = vmatprep.subr.mxu0 0.0
        %695 = vmatpush1.msra.mxu0 0.0
        %696 = vmatprep.subr.mxu0 0.0
        %697 = vmatpush1.msra.mxu0 0.0
        %698 = vmatprep.subr.mxu0 0.0
        %699 = vmatpush1.msra.mxu0 0.0
        %700 = vmatprep.subr.mxu0 0.0
        %701 = vmatpush1.msra.mxu0 0.0
        %702 = vmatprep.subr.mxu0 0.0
        %703 = vmatpush1.msra.mxu0 0.0
        %704 = vmatprep.subr.mxu0 0.0
        %705 = vmatpush1.msra.mxu0 0.0
        %706 = vmatprep.subr.mxu0 0.0
        %707 = vmatpush1.msra.mxu0 0.0
        %708 = vmatprep.subr.mxu0 0.0
        %709 = vmatpush1.msra.mxu0 0.0
        %710 = vmatprep.subr.mxu0 0.0
        %711 = vmatpush1.msra.mxu0 0.0
        %712 = vmatprep.subr.mxu0 0.0
        %713 = vmatpush1.msra.mxu0 0.0
        %714 = vmatprep.subr.mxu0 0.0
        %715 = vmatpush1.msra.mxu0 0.0
        %716 = vmatprep.subr.mxu0 0.0
        %717 = vmatpush1.msra.mxu0 0.0
        %718 = vmatprep.subr.mxu0 0.0
        %719 = vmatpush1.msra.mxu0 0.0
        %720 = vmatprep.subr.mxu0 0.0
        %721 = vmatpush1.msra.mxu0 0.0
        %722 = vmatprep.subr.mxu0 0.0
        %723 = vmatpush1.msra.mxu0 0.0
        %724 = vmatprep.subr.mxu0 0.0
        %725 = vmatpush1.msra.mxu0 0.0
        %726 = vmatprep.subr.mxu0 0.0
        %727 = vmatpush1.msra.mxu0 0.0
        %728 = vmatprep.subr.mxu0 0.0
        %729 = vmatpush1.msra.mxu0 0.0
        %730 = vmatprep.subr.mxu0 0.0
        %731 = vmatpush1.msra.mxu0 0.0
        %732 = vmatprep.mubr.f32.mxu0 0.0
        %733 = vmatmul.mubr.f32.gmra.mrb[0].mxu0 %v651
        %v734 = vpop.f32.mrb[0].mxu0
        %v735 = vadd.f32 %v633, %v734
        %v736 = vpop.f32.mrb[0].mxu0
        %v737 = vadd.f32 %v633, %v736
        %738 = vmatprep.mubr.f32.mxu0 0.0
        %739 = vmatmul.mubr.f32.gmra.mrb[0].mxu0 %v654
        %v740 = vpop.f32.mrb[0].mxu0
        %v741 = vadd.f32 %v638, %v740
        %v742 = vpop.f32.mrb[0].mxu0
        %v743 = vadd.f32 %v638, %v742
        %744 = vmatprep.mubr.f32.mxu0 0.0
        %745 = vmatmul.mubr.f32.gmra.mrb[0].mxu0 %v657
        %v746 = vpop.f32.mrb[0].mxu0
        %v747 = vadd.f32 %v643, %v746
        %v748 = vpop.f32.mrb[0].mxu0
        %v749 = vadd.f32 %v643, %v748
        %750 = vmatprep.mubr.f32.mxu0 0.0
        %751 = vmatmul.mubr.f32.gmra.mrb[0].mxu0 %v660
        %v752 = vpop.f32.mrb[0].mxu0
        %v753 = vadd.f32 %v648, %v752
        %v754 = vpop.f32.mrb[0].mxu0
        %v755 = vadd.f32 %v648, %v754
        %756 = vdwg.mxu0
        %757 = vst [vmem:[%s290] sm:$0xff] %v735
        %758 = vst [vmem:[%s290 + $0x8] sm:$0xff] %v737
        %759 = vst [vmem:[%s290 + $0x10] sm:$0xff] %v741
        %760 = vst [vmem:[%s290 + $0x18] sm:$0xff] %v743
        %761 = vst [vmem:[%s290 + $0x20] sm:$0xff] %v747
        %762 = vst [vmem:[%s290 + $0x28] sm:$0xff] %v749
        %763 = vst [vmem:[%s290 + $0x30] sm:$0xff] %v753
        %764 = vst [vmem:[%s290 + $0x38] sm:$0xff] %v755
      $region52: #{attention_module.1} parent=47 // pred_fallthru
        _
      %s765 = smul.u32 %s23, 128
      %s766 = sshra.s32 %s765, 7
      %s767 = sand.u32 %s765, 127
      %s768 = smul.addr %s766, 8
      %s769 = scalar_lea.vmem %s285, %s768
      %v770 = vld [vmem:[%s769] sm:$0xff]
      %v771 = vld [vmem:[%s769 + $0x10] sm:$0xff]
      %v772 = vld [vmem:[%s769 + $0x20] sm:$0xff]
      %v773 = vld [vmem:[%s769 + $0x30] sm:$0xff]
      %v774 = vld [vmem:[%s3] sm:$0xff]
      %v775 = vld [vmem:[%s3 + $0x8] sm:$0xff]
      %v776 = vld [vmem:[%s3 + $0x10] sm:$0xff]
      %v777 = vld [vmem:[%s3 + $0x18] sm:$0xff]
      %v778 = vld [vmem:[%s3 + $0x20] sm:$0xff]
      %v779 = vld [vmem:[%s4] sm:$0xff]
      %v780 = vld [vmem:[%s4 + $0x8] sm:$0xff]
      %v781 = vld [vmem:[%s4 + $0x10] sm:$0xff]
      %v782 = vld [vmem:[%s4 + $0x18] sm:$0xff]
      %v783 = vld [vmem:[%s4 + $0x20] sm:$0xff]
      %785 = vset.pattern.permute.xlu0 0
      %786 = vperm.xlu0 %785, %v779
      %v787 = vpop.permute.xlu0 %786
      %790 = vset.pattern.permute.xlu0 0
      %791 = vperm.xlu0 %790, %v780
      %v792 = vpop.permute.xlu0 %791
      %795 = vset.pattern.permute.xlu0 0
      %796 = vperm.xlu0 %795, %v781
      %v797 = vpop.permute.xlu0 %796
      %800 = vset.pattern.permute.xlu0 0
      %801 = vperm.xlu0 %800, %v782
      %v802 = vpop.permute.xlu0 %801
      %805 = vset.pattern.permute.xlu0 0
      %806 = vperm.xlu0 %805, %v783
      %v807 = vpop.permute.xlu0 %806
      %vm809 = vcmask 261120
      %v811 = vsel %vm809, %v774, 0
      %v814 = vsel %vm809, %v775, 0
      %v817 = vsel %vm809, %v776, 0
      %v820 = vsel %vm809, %v777, 0
      %v823 = vsel %vm809, %v778, 0
      %825 = vmatprep.subr.mxu0 0.0
      %826 = vmatpush1.msra.mxu0 %v770
      %827 = vmatprep.subr.mxu0 0.0
      %828 = vmatpush1.msra.mxu0 %v771
      %829 = vmatprep.subr.mxu0 0.0
      %830 = vmatpush1.msra.mxu0 %v772
      %831 = vmatprep.subr.mxu0 0.0
      %832 = vmatpush1.msra.mxu0 %v773
      %833 = vmatprep.subr.mxu0 0.0
      %834 = vmatpush1.msra.mxu0 0.0
      %835 = vmatprep.subr.mxu0 0.0
      %836 = vmatpush1.msra.mxu0 0.0
      %837 = vmatprep.subr.mxu0 0.0
      %838 = vmatpush1.msra.mxu0 0.0
      %839 = vmatprep.subr.mxu0 0.0
      %840 = vmatpush1.msra.mxu0 0.0
      %841 = vmatprep.subr.mxu0 0.0
      %842 = vmatpush1.msra.mxu0 0.0
      %843 = vmatprep.subr.mxu0 0.0
      %844 = vmatpush1.msra.mxu0 0.0
      %845 = vmatprep.subr.mxu0 0.0
      %846 = vmatpush1.msra.mxu0 0.0
      %847 = vmatprep.subr.mxu0 0.0
      %848 = vmatpush1.msra.mxu0 0.0
      %849 = vmatprep.subr.mxu0 0.0
      %850 = vmatpush1.msra.mxu0 0.0
      %851 = vmatprep.subr.mxu0 0.0
      %852 = vmatpush1.msra.mxu0 0.0
      %853 = vmatprep.subr.mxu0 0.0
      %854 = vmatpush1.msra.mxu0 0.0
      %855 = vmatprep.subr.mxu0 0.0
      %856 = vmatpush1.msra.mxu0 0.0
      %857 = vmatprep.subr.mxu0 0.0
      %858 = vmatpush1.msra.mxu0 0.0
      %859 = vmatprep.subr.mxu0 0.0
      %860 = vmatpush1.msra.mxu0 0.0
      %861 = vmatprep.subr.mxu0 0.0
      %862 = vmatpush1.msra.mxu0 0.0
      %863 = vmatprep.subr.mxu0 0.0
      %864 = vmatpush1.msra.mxu0 0.0
      %865 = vmatprep.subr.mxu0 0.0
      %866 = vmatpush1.msra.mxu0 0.0
      %867 = vmatprep.subr.mxu0 0.0
      %868 = vmatpush1.msra.mxu0 0.0
      %869 = vmatprep.subr.mxu0 0.0
      %870 = vmatpush1.msra.mxu0 0.0
      %871 = vmatprep.subr.mxu0 0.0
      %872 = vmatpush1.msra.mxu0 0.0
      %873 = vmatprep.subr.mxu0 0.0
      %874 = vmatpush1.msra.mxu0 0.0
      %875 = vmatprep.subr.mxu0 0.0
      %876 = vmatpush1.msra.mxu0 0.0
      %877 = vmatprep.subr.mxu0 0.0
      %878 = vmatpush1.msra.mxu0 0.0
      %879 = vmatprep.subr.mxu0 0.0
      %880 = vmatpush1.msra.mxu0 0.0
      %881 = vmatprep.subr.mxu0 0.0
      %882 = vmatpush1.msra.mxu0 0.0
      %883 = vmatprep.subr.mxu0 0.0
      %884 = vmatpush1.msra.mxu0 0.0
      %885 = vmatprep.subr.mxu0 0.0
      %886 = vmatpush1.msra.mxu0 0.0
      %887 = vmatprep.subr.mxu0 0.0
      %888 = vmatpush1.msra.mxu0 0.0
      %889 = vmatprep.mubr.f32.mxu0 0.0
      %890 = vmatmul.mubr.f32.gmra.mrb[0].mxu0 %v811
      %v891 = vpop.f32.mrb[0].mxu0
      %v892 = vadd.f32 %v787, %v891
      %v893 = vpop.f32.mrb[0].mxu0
      %894 = vmatprep.mubr.f32.mxu0 0.0
      %895 = vmatmul.mubr.f32.gmra.mrb[0].mxu0 %v814
      %v896 = vpop.f32.mrb[0].mxu0
      %v897 = vadd.f32 %v792, %v896
      %v898 = vpop.f32.mrb[0].mxu0
      %899 = vmatprep.mubr.f32.mxu0 0.0
      %900 = vmatmul.mubr.f32.gmra.mrb[0].mxu0 %v817
      %v901 = vpop.f32.mrb[0].mxu0
      %v902 = vadd.f32 %v797, %v901
      %v903 = vpop.f32.mrb[0].mxu0
      %904 = vmatprep.mubr.f32.mxu0 0.0
      %905 = vmatmul.mubr.f32.gmra.mrb[0].mxu0 %v820
      %v906 = vpop.f32.mrb[0].mxu0
      %v907 = vadd.f32 %v802, %v906
      %v908 = vpop.f32.mrb[0].mxu0
      %909 = vmatprep.mubr.f32.mxu0 0.0
      %910 = vmatmul.mubr.f32.gmra.mrb[0].mxu0 %v823
      %v911 = vpop.f32.mrb[0].mxu0
      %v912 = vadd.f32 %v807, %v911
      %v913 = vpop.f32.mrb[0].mxu0
      %914 = vdwg.mxu0
      %v915 = vld [vmem:[#allocation2] sm:$0xff]
      %916 = vxpose.xlu0.b32.start [1/16] %v892, 128
      %917 = vxpose.xlu0.b32.cont [2/16] 0.0, 128
      %918 = vxpose.xlu0.b32.cont [3/16] 0.0, 128
      %919 = vxpose.xlu0.b32.cont [4/16] 0.0, 128
      %920 = vxpose.xlu0.b32.cont [5/16] 0.0, 128
      %921 = vxpose.xlu0.b32.cont [6/16] 0.0, 128
      %922 = vxpose.xlu0.b32.cont [7/16] 0.0, 128
      %923 = vxpose.xlu0.b32.cont [8/16] 0.0, 128
      %924 = vxpose.xlu0.b32.cont [9/16] 0.0, 128
      %925 = vxpose.xlu0.b32.cont [10/16] 0.0, 128
      %926 = vxpose.xlu0.b32.cont [11/16] 0.0, 128
      %927 = vxpose.xlu0.b32.cont [12/16] 0.0, 128
      %928 = vxpose.xlu0.b32.cont [13/16] 0.0, 128
      %929 = vxpose.xlu0.b32.cont [14/16] 0.0, 128
      %930 = vxpose.xlu0.b32.cont [15/16] 0.0, 128
      %931 = vxpose.xlu0.b32.end [16/16] 0.0, 128
      %v932 = vpop.trf.xlu0
      %v933 = vpop.trf.xlu0
      %v934 = vpop.trf.xlu0
      %v935 = vpop.trf.xlu0
      %v936 = vpop.trf.xlu0
      %v937 = vpop.trf.xlu0
      %v938 = vpop.trf.xlu0
      %v939 = vpop.trf.xlu0
      %v940 = vpop.trf.xlu0
      %v941 = vpop.trf.xlu0
      %v942 = vpop.trf.xlu0
      %v943 = vpop.trf.xlu0
      %v944 = vpop.trf.xlu0
      %v945 = vpop.trf.xlu0
      %v946 = vpop.trf.xlu0
      %v947 = vpop.trf.xlu0
      %v949 = vcombine.high %v915, %v915
      %vm950 = vcmask 31744
      %v952 = vsel %vm950, %v932, 0
      %v955 = vsel %vm950, %v933, 0
      %v958 = vsel %vm950, %v934, 0
      %v961 = vsel %vm950, %v935, 0
      %v964 = vsel %vm950, %v936, 0
      %v967 = vsel %vm950, %v937, 0
      %v970 = vsel %vm950, %v938, 0
      %v973 = vsel %vm950, %v939, 0
      %v976 = vsel %vm950, %v940, 0
      %v979 = vsel %vm950, %v941, 0
      %v982 = vsel %vm950, %v942, 0
      %v985 = vsel %vm950, %v943, 0
      %v988 = vsel %vm950, %v944, 0
      %v991 = vsel %vm950, %v945, 0
      %v994 = vsel %vm950, %v946, 0
      %v997 = vsel %vm950, %v947, 0
      %vm999 = vcmask 1043456
      %v1000 = vsel %vm999, %v915, 0
      %v1002 = vsel %vm999, %v949, 0
      %1004 = vmatprep.subr.mxu0 %v1002
      %1005 = vmatpush1.msra.mxu0 %v1000
      %1006 = vmatprep.subr.mxu0 0.0
      %1007 = vmatpush1.msra.mxu0 0.0
      %1008 = vmatprep.subr.mxu0 0.0
      %1009 = vmatpush1.msra.mxu0 0.0
      %1010 = vmatprep.subr.mxu0 0.0
      %1011 = vmatpush1.msra.mxu0 0.0
      %1012 = vmatprep.subr.mxu0 0.0
      %1013 = vmatpush1.msra.mxu0 0.0
      %1014 = vmatprep.subr.mxu0 0.0
      %1015 = vmatpush1.msra.mxu0 0.0
      %1016 = vmatprep.subr.mxu0 0.0
      %1017 = vmatpush1.msra.mxu0 0.0
      %1018 = vmatprep.subr.mxu0 0.0
      %1019 = vmatpush1.msra.mxu0 0.0
      %1020 = vmatprep.subr.mxu0 0.0
      %1021 = vmatpush1.msra.mxu0 0.0
      %1022 = vmatprep.subr.mxu0 0.0
      %1023 = vmatpush1.msra.mxu0 0.0
      %1024 = vmatprep.subr.mxu0 0.0
      %1025 = vmatpush1.msra.mxu0 0.0
      %1026 = vmatprep.subr.mxu0 0.0
      %1027 = vmatpush1.msra.mxu0 0.0
      %1028 = vmatprep.subr.mxu0 0.0
      %1029 = vmatpush1.msra.mxu0 0.0
      %1030 = vmatprep.subr.mxu0 0.0
      %1031 = vmatpush1.msra.mxu0 0.0
      %1032 = vmatprep.subr.mxu0 0.0
      %1033 = vmatpush1.msra.mxu0 0.0
      %1034 = vmatprep.subr.mxu0 0.0
      %1035 = vmatpush1.msra.mxu0 0.0
      %1036 = vmatprep.subr.mxu0 0.0
      %1037 = vmatpush1.msra.mxu0 0.0
      %1038 = vmatprep.subr.mxu0 0.0
      %1039 = vmatpush1.msra.mxu0 0.0
      %1040 = vmatprep.subr.mxu0 0.0
      %1041 = vmatpush1.msra.mxu0 0.0
      %1042 = vmatprep.subr.mxu0 0.0
      %1043 = vmatpush1.msra.mxu0 0.0
      %1044 = vmatprep.subr.mxu0 0.0
      %1045 = vmatpush1.msra.mxu0 0.0
      %1046 = vmatprep.subr.mxu0 0.0
      %1047 = vmatpush1.msra.mxu0 0.0
      %1048 = vmatprep.subr.mxu0 0.0
      %1049 = vmatpush1.msra.mxu0 0.0
      %1050 = vmatprep.subr.mxu0 0.0
      %1051 = vmatpush1.msra.mxu0 0.0
      %1052 = vmatprep.subr.mxu0 0.0
      %1053 = vmatpush1.msra.mxu0 0.0
      %1054 = vmatprep.subr.mxu0 0.0
      %1055 = vmatpush1.msra.mxu0 0.0
      %1056 = vmatprep.subr.mxu0 0.0
      %1057 = vmatpush1.msra.mxu0 0.0
      %1058 = vmatprep.subr.mxu0 0.0
      %1059 = vmatpush1.msra.mxu0 0.0
      %1060 = vmatprep.subr.mxu0 0.0
      %1061 = vmatpush1.msra.mxu0 0.0
      %1062 = vmatprep.subr.mxu0 0.0
      %1063 = vmatpush1.msra.mxu0 0.0
      %1064 = vmatprep.subr.mxu0 0.0
      %1065 = vmatpush1.msra.mxu0 0.0
      %1066 = vmatprep.subr.mxu0 0.0
      %1067 = vmatpush1.msra.mxu0 0.0
      %1068 = vmatprep.mubr.f32.mxu0 0.0
      %1069 = vmatmul.mubr.f32.gmra.mrb[0].mxu0 %v952
      %v1070 = vpop.f32.mrb[0].mxu0
      %v1071 = vadd.f32 0.0, %v1070
      %v1072 = vpop.f32.mrb[0].mxu0
      %v1073 = vadd.f32 0.0, %v1072
      %1074 = vmatprep.mubr.f32.mxu0 0.0
      %1075 = vmatmul.mubr.f32.gmra.mrb[0].mxu0 %v955
      %v1076 = vpop.f32.mrb[0].mxu0
      %v1077 = vadd.f32 0.0, %v1076
      %v1078 = vpop.f32.mrb[0].mxu0
      %v1079 = vadd.f32 0.0, %v1078
      %1080 = vmatprep.mubr.f32.mxu0 0.0
      %1081 = vmatmul.mubr.f32.gmra.mrb[0].mxu0 %v958
      %v1082 = vpop.f32.mrb[0].mxu0
      %v1083 = vadd.f32 0.0, %v1082
      %v1084 = vpop.f32.mrb[0].mxu0
      %v1085 = vadd.f32 0.0, %v1084
      %1086 = vmatprep.mubr.f32.mxu0 0.0
      %1087 = vmatmul.mubr.f32.gmra.mrb[0].mxu0 %v961
      %v1088 = vpop.f32.mrb[0].mxu0
      %v1089 = vadd.f32 0.0, %v1088
      %v1090 = vpop.f32.mrb[0].mxu0
      %v1091 = vadd.f32 0.0, %v1090
      %1092 = vmatprep.mubr.f32.mxu0 0.0
      %1093 = vmatmul.mubr.f32.gmra.mrb[0].mxu0 %v964
      %v1094 = vpop.f32.mrb[0].mxu0
      %v1095 = vadd.f32 0.0, %v1094
      %v1096 = vpop.f32.mrb[0].mxu0
      %v1097 = vadd.f32 0.0, %v1096
      %1098 = vmatprep.mubr.f32.mxu0 0.0
      %1099 = vmatmul.mubr.f32.gmra.mrb[0].mxu0 %v967
      %v1100 = vpop.f32.mrb[0].mxu0
      %v1101 = vadd.f32 0.0, %v1100
      %v1102 = vpop.f32.mrb[0].mxu0
      %v1103 = vadd.f32 0.0, %v1102
      %1104 = vmatprep.mubr.f32.mxu0 0.0
      %1105 = vmatmul.mubr.f32.gmra.mrb[0].mxu0 %v970
      %v1106 = vpop.f32.mrb[0].mxu0
      %v1107 = vadd.f32 0.0, %v1106
      %v1108 = vpop.f32.mrb[0].mxu0
      %v1109 = vadd.f32 0.0, %v1108
      %1110 = vmatprep.mubr.f32.mxu0 0.0
      %1111 = vmatmul.mubr.f32.gmra.mrb[0].mxu0 %v973
      %v1112 = vpop.f32.mrb[0].mxu0
      %v1113 = vadd.f32 0.0, %v1112
      %v1114 = vpop.f32.mrb[0].mxu0
      %v1115 = vadd.f32 0.0, %v1114
      %1116 = vmatprep.mubr.f32.mxu0 0.0
      %1117 = vmatmul.mubr.f32.gmra.mrb[0].mxu0 %v976
      %v1118 = vpop.f32.mrb[0].mxu0
      %v1119 = vadd.f32 0.0, %v1118
      %v1120 = vpop.f32.mrb[0].mxu0
      %v1121 = vadd.f32 0.0, %v1120
      %1122 = vmatprep.mubr.f32.mxu0 0.0
      %1123 = vmatmul.mubr.f32.gmra.mrb[0].mxu0 %v979
      %v1124 = vpop.f32.mrb[0].mxu0
      %v1125 = vadd.f32 0.0, %v1124
      %v1126 = vpop.f32.mrb[0].mxu0
      %v1127 = vadd.f32 0.0, %v1126
      %1128 = vmatprep.mubr.f32.mxu0 0.0
      %1129 = vmatmul.mubr.f32.gmra.mrb[0].mxu0 %v982
      %v1130 = vpop.f32.mrb[0].mxu0
      %v1131 = vadd.f32 0.0, %v1130
      %v1132 = vpop.f32.mrb[0].mxu0
      %v1133 = vadd.f32 0.0, %v1132
      %1134 = vmatprep.mubr.f32.mxu0 0.0
      %1135 = vmatmul.mubr.f32.gmra.mrb[0].mxu0 %v985
      %v1136 = vpop.f32.mrb[0].mxu0
      %v1137 = vadd.f32 0.0, %v1136
      %v1138 = vpop.f32.mrb[0].mxu0
      %v1139 = vadd.f32 0.0, %v1138
      %1140 = vmatprep.mubr.f32.mxu0 0.0
      %1141 = vmatmul.mubr.f32.gmra.mrb[0].mxu0 %v988
      %v1142 = vpop.f32.mrb[0].mxu0
      %v1143 = vadd.f32 0.0, %v1142
      %v1144 = vpop.f32.mrb[0].mxu0
      %v1145 = vadd.f32 0.0, %v1144
      %1146 = vmatprep.mubr.f32.mxu0 0.0
      %1147 = vmatmul.mubr.f32.gmra.mrb[0].mxu0 %v991
      %v1148 = vpop.f32.mrb[0].mxu0
      %v1149 = vadd.f32 0.0, %v1148
      %v1150 = vpop.f32.mrb[0].mxu0
      %v1151 = vadd.f32 0.0, %v1150
      %1152 = vmatprep.mubr.f32.mxu0 0.0
      %1153 = vmatmul.mubr.f32.gmra.mrb[0].mxu0 %v994
      %v1154 = vpop.f32.mrb[0].mxu0
      %v1155 = vadd.f32 0.0, %v1154
      %v1156 = vpop.f32.mrb[0].mxu0
      %v1157 = vadd.f32 0.0, %v1156
      %1158 = vmatprep.mubr.f32.mxu0 0.0
      %1159 = vmatmul.mubr.f32.gmra.mrb[0].mxu0 %v997
      %v1160 = vpop.f32.mrb[0].mxu0
      %v1161 = vadd.f32 0.0, %v1160
      %v1162 = vpop.f32.mrb[0].mxu0
      %v1163 = vadd.f32 0.0, %v1162
      %1164 = vdwg.mxu0
      %v1165 = vmax.f32 %v1071, %v1073
      %1166 = vmax.xlane.f32.xlu0 %v1165
      %v1167 = vpop.xlane.xlu0 %1166
      %v1168 = vmax.f32 %v1077, %v1079
      %1169 = vmax.xlane.f32.xlu0 %v1168
      %v1170 = vpop.xlane.xlu0 %1169
      %v1171 = vmax.f32 %v1083, %v1085
      %1172 = vmax.xlane.f32.xlu0 %v1171
      %v1173 = vpop.xlane.xlu0 %1172
      %v1174 = vmax.f32 %v1089, %v1091
      %1175 = vmax.xlane.f32.xlu0 %v1174
      %v1176 = vpop.xlane.xlu0 %1175
      %v1177 = vmax.f32 %v1095, %v1097
      %1178 = vmax.xlane.f32.xlu0 %v1177
      %v1179 = vpop.xlane.xlu0 %1178
      %v1180 = vmax.f32 %v1101, %v1103
      %1181 = vmax.xlane.f32.xlu0 %v1180
      %v1182 = vpop.xlane.xlu0 %1181
      %v1183 = vmax.f32 %v1107, %v1109
      %1184 = vmax.xlane.f32.xlu0 %v1183
      %v1185 = vpop.xlane.xlu0 %1184
      %v1186 = vmax.f32 %v1113, %v1115
      %1187 = vmax.xlane.f32.xlu0 %v1186
      %v1188 = vpop.xlane.xlu0 %1187
      %v1189 = vmax.f32 %v1119, %v1121
      %1190 = vmax.xlane.f32.xlu0 %v1189
      %v1191 = vpop.xlane.xlu0 %1190
      %v1192 = vmax.f32 %v1125, %v1127
      %1193 = vmax.xlane.f32.xlu0 %v1192
      %v1194 = vpop.xlane.xlu0 %1193
      %v1195 = vmax.f32 %v1131, %v1133
      %1196 = vmax.xlane.f32.xlu0 %v1195
      %v1197 = vpop.xlane.xlu0 %1196
      %v1198 = vmax.f32 %v1137, %v1139
      %1199 = vmax.xlane.f32.xlu0 %v1198
      %v1200 = vpop.xlane.xlu0 %1199
      %v1201 = vmax.f32 %v1143, %v1145
      %1202 = vmax.xlane.f32.xlu0 %v1201
      %v1203 = vpop.xlane.xlu0 %1202
      %v1204 = vmax.f32 %v1149, %v1151
      %1205 = vmax.xlane.f32.xlu0 %v1204
      %v1206 = vpop.xlane.xlu0 %1205
      %v1207 = vmax.f32 %v1155, %v1157
      %1208 = vmax.xlane.f32.xlu0 %v1207
      %v1209 = vpop.xlane.xlu0 %1208
      %v1210 = vmax.f32 %v1161, %v1163
      %1211 = vmax.xlane.f32.xlu0 %v1210
      %v1212 = vpop.xlane.xlu0 %1211
      %v1213 = vsub.f32 %v1071, %v1167
      %v1214 = vsub.f32 %v1073, %v1167
      %v1215 = vsub.f32 %v1077, %v1170
      %v1216 = vsub.f32 %v1079, %v1170
      %v1217 = vsub.f32 %v1083, %v1173
      %v1218 = vsub.f32 %v1085, %v1173
      %v1219 = vsub.f32 %v1089, %v1176
      %v1220 = vsub.f32 %v1091, %v1176
      %v1221 = vsub.f32 %v1095, %v1179
      %v1222 = vsub.f32 %v1097, %v1179
      %v1223 = vsub.f32 %v1101, %v1182
      %v1224 = vsub.f32 %v1103, %v1182
      %v1225 = vsub.f32 %v1107, %v1185
      %v1226 = vsub.f32 %v1109, %v1185
      %v1227 = vsub.f32 %v1113, %v1188
      %v1228 = vsub.f32 %v1115, %v1188
      %v1229 = vsub.f32 %v1119, %v1191
      %v1230 = vsub.f32 %v1121, %v1191
      %v1231 = vsub.f32 %v1125, %v1194
      %v1232 = vsub.f32 %v1127, %v1194
      %v1233 = vsub.f32 %v1131, %v1197
      %v1234 = vsub.f32 %v1133, %v1197
      %v1235 = vsub.f32 %v1137, %v1200
      %v1236 = vsub.f32 %v1139, %v1200
      %v1237 = vsub.f32 %v1143, %v1203
      %v1238 = vsub.f32 %v1145, %v1203
      %v1239 = vsub.f32 %v1149, %v1206
      %v1240 = vsub.f32 %v1151, %v1206
      %v1241 = vsub.f32 %v1155, %v1209
      %v1242 = vsub.f32 %v1157, %v1209
      %v1243 = vsub.f32 %v1161, %v1212
      %v1244 = vsub.f32 %v1163, %v1212
      %v1245 = vmul.f32 %v1213, 1.442695
      %v1246 = vpow.pop %v1245
      %v1247 = vmul.f32 %v1214, 1.442695
      %v1248 = vpow.pop %v1247
      %v1249 = vmul.f32 %v1215, 1.442695
      %v1250 = vpow.pop %v1249
      %v1251 = vmul.f32 %v1216, 1.442695
      %v1252 = vpow.pop %v1251
      %v1253 = vmul.f32 %v1217, 1.442695
      %v1254 = vpow.pop %v1253
      %v1255 = vmul.f32 %v1218, 1.442695
      %v1256 = vpow.pop %v1255
      %v1257 = vmul.f32 %v1219, 1.442695
      %v1258 = vpow.pop %v1257
      %v1259 = vmul.f32 %v1220, 1.442695
      %v1260 = vpow.pop %v1259
      %v1261 = vmul.f32 %v1221, 1.442695
      %v1262 = vpow.pop %v1261
      %v1263 = vmul.f32 %v1222, 1.442695
      %v1264 = vpow.pop %v1263
      %v1265 = vmul.f32 %v1223, 1.442695
      %v1266 = vpow.pop %v1265
      %v1267 = vmul.f32 %v1224, 1.442695
      %v1268 = vpow.pop %v1267
      %v1269 = vmul.f32 %v1225, 1.442695
      %v1270 = vpow.pop %v1269
      %v1271 = vmul.f32 %v1226, 1.442695
      %v1272 = vpow.pop %v1271
      %v1273 = vmul.f32 %v1227, 1.442695
      %v1274 = vpow.pop %v1273
      %v1275 = vmul.f32 %v1228, 1.442695
      %v1276 = vpow.pop %v1275
      %v1277 = vmul.f32 %v1229, 1.442695
      %v1278 = vpow.pop %v1277
      %v1279 = vmul.f32 %v1230, 1.442695
      %v1280 = vpow.pop %v1279
      %v1281 = vmul.f32 %v1231, 1.442695
      %v1282 = vpow.pop %v1281
      %v1283 = vmul.f32 %v1232, 1.442695
      %v1284 = vpow.pop %v1283
      %v1285 = vmul.f32 %v1233, 1.442695
      %v1286 = vpow.pop %v1285
      %v1287 = vmul.f32 %v1234, 1.442695
      %v1288 = vpow.pop %v1287
      %v1289 = vmul.f32 %v1235, 1.442695
      %v1290 = vpow.pop %v1289
      %v1291 = vmul.f32 %v1236, 1.442695
      %v1292 = vpow.pop %v1291
      %v1293 = vmul.f32 %v1237, 1.442695
      %v1294 = vpow.pop %v1293
      %v1295 = vmul.f32 %v1238, 1.442695
      %v1296 = vpow.pop %v1295
      %v1297 = vmul.f32 %v1239, 1.442695
      %v1298 = vpow.pop %v1297
      %v1299 = vmul.f32 %v1240, 1.442695
      %v1300 = vpow.pop %v1299
      %v1301 = vmul.f32 %v1241, 1.442695
      %v1302 = vpow.pop %v1301
      %v1303 = vmul.f32 %v1242, 1.442695
      %v1304 = vpow.pop %v1303
      %v1305 = vmul.f32 %v1243, 1.442695
      %v1306 = vpow.pop %v1305
      %v1307 = vmul.f32 %v1244, 1.442695
      %v1308 = vpow.pop %v1307
      %v1309 = vadd.f32 %v1246, %v1248
      %1310 = vadd.xlane.f32.xlu0 %v1309
      %v1311 = vpop.xlane.xlu0 %1310
      %v1312 = vadd.f32 %v1250, %v1252
      %1313 = vadd.xlane.f32.xlu0 %v1312
      %v1314 = vpop.xlane.xlu0 %1313
      %v1315 = vadd.f32 %v1254, %v1256
      %1316 = vadd.xlane.f32.xlu0 %v1315
      %v1317 = vpop.xlane.xlu0 %1316
      %v1318 = vadd.f32 %v1258, %v1260
      %1319 = vadd.xlane.f32.xlu0 %v1318
      %v1320 = vpop.xlane.xlu0 %1319
      %v1321 = vadd.f32 %v1262, %v1264
      %1322 = vadd.xlane.f32.xlu0 %v1321
      %v1323 = vpop.xlane.xlu0 %1322
      %v1324 = vadd.f32 %v1266, %v1268
      %1325 = vadd.xlane.f32.xlu0 %v1324
      %v1326 = vpop.xlane.xlu0 %1325
      %v1327 = vadd.f32 %v1270, %v1272
      %1328 = vadd.xlane.f32.xlu0 %v1327
      %v1329 = vpop.xlane.xlu0 %1328
      %v1330 = vadd.f32 %v1274, %v1276
      %1331 = vadd.xlane.f32.xlu0 %v1330
      %v1332 = vpop.xlane.xlu0 %1331
      %v1333 = vadd.f32 %v1278, %v1280
      %1334 = vadd.xlane.f32.xlu0 %v1333
      %v1335 = vpop.xlane.xlu0 %1334
      %v1336 = vadd.f32 %v1282, %v1284
      %1337 = vadd.xlane.f32.xlu0 %v1336
      %v1338 = vpop.xlane.xlu0 %1337
      %v1339 = vadd.f32 %v1286, %v1288
      %1340 = vadd.xlane.f32.xlu0 %v1339
      %v1341 = vpop.xlane.xlu0 %1340
      %v1342 = vadd.f32 %v1290, %v1292
      %1343 = vadd.xlane.f32.xlu0 %v1342
      %v1344 = vpop.xlane.xlu0 %1343
      %v1345 = vadd.f32 %v1294, %v1296
      %1346 = vadd.xlane.f32.xlu0 %v1345
      %v1347 = vpop.xlane.xlu0 %1346
      %v1348 = vadd.f32 %v1298, %v1300
      %1349 = vadd.xlane.f32.xlu0 %v1348
      %v1350 = vpop.xlane.xlu0 %1349
      %v1351 = vadd.f32 %v1302, %v1304
      %1352 = vadd.xlane.f32.xlu0 %v1351
      %v1353 = vpop.xlane.xlu0 %1352
      %v1354 = vadd.f32 %v1306, %v1308
      %1355 = vadd.xlane.f32.xlu0 %v1354
      %v1356 = vpop.xlane.xlu0 %1355
      %v1357 = vrcp.pop %v1311
      %v1358 = vrcp.pop %v1314
      %v1359 = vrcp.pop %v1317
      %v1360 = vrcp.pop %v1320
      %v1361 = vrcp.pop %v1323
      %v1362 = vrcp.pop %v1326
      %v1363 = vrcp.pop %v1329
      %v1364 = vrcp.pop %v1332
      %v1365 = vrcp.pop %v1335
      %v1366 = vrcp.pop %v1338
      %v1367 = vrcp.pop %v1341
      %v1368 = vrcp.pop %v1344
      %v1369 = vrcp.pop %v1347
      %v1370 = vrcp.pop %v1350
      %v1371 = vrcp.pop %v1353
      %v1372 = vrcp.pop %v1356
      %v1373 = vmul.f32 %v1246, %v1357
      %v1374 = vmul.f32 %v1248, %v1357
      %v1375 = vmul.f32 %v1250, %v1358
      %v1376 = vmul.f32 %v1252, %v1358
      %v1377 = vmul.f32 %v1254, %v1359
      %v1378 = vmul.f32 %v1256, %v1359
      %v1379 = vmul.f32 %v1258, %v1360
      %v1380 = vmul.f32 %v1260, %v1360
      %v1381 = vmul.f32 %v1262, %v1361
      %v1382 = vmul.f32 %v1264, %v1361
      %v1383 = vmul.f32 %v1266, %v1362
      %v1384 = vmul.f32 %v1268, %v1362
      %v1385 = vmul.f32 %v1270, %v1363
      %v1386 = vmul.f32 %v1272, %v1363
      %v1387 = vmul.f32 %v1274, %v1364
      %v1388 = vmul.f32 %v1276, %v1364
      %v1389 = vmul.f32 %v1278, %v1365
      %v1390 = vmul.f32 %v1280, %v1365
      %v1391 = vmul.f32 %v1282, %v1366
      %v1392 = vmul.f32 %v1284, %v1366
      %v1393 = vmul.f32 %v1286, %v1367
      %v1394 = vmul.f32 %v1288, %v1367
      %v1395 = vmul.f32 %v1290, %v1368
      %v1396 = vmul.f32 %v1292, %v1368
      %v1397 = vmul.f32 %v1294, %v1369
      %v1398 = vmul.f32 %v1296, %v1369
      %v1399 = vmul.f32 %v1298, %v1370
      %v1400 = vmul.f32 %v1300, %v1370
      %v1401 = vmul.f32 %v1302, %v1371
      %v1402 = vmul.f32 %v1304, %v1371
      %v1403 = vmul.f32 %v1306, %v1372
      %v1404 = vmul.f32 %v1308, %v1372
      %v1405 = vld [vmem:[%s290] sm:$0xff]
      %v1406 = vld [vmem:[%s290 + $0x8] sm:$0xff]
      %v1407 = vld [vmem:[%s290 + $0x10] sm:$0xff]
      %v1408 = vld [vmem:[%s290 + $0x18] sm:$0xff]
      %v1409 = vld [vmem:[%s290 + $0x20] sm:$0xff]
      %v1410 = vld [vmem:[%s290 + $0x28] sm:$0xff]
      %v1411 = vld [vmem:[%s290 + $0x30] sm:$0xff]
      %v1412 = vld [vmem:[%s290 + $0x38] sm:$0xff]
      %1413 = vmatprep.subr.mxu0 %v1374
      %1414 = vmatpush1.msra.mxu0 %v1373
      %1415 = vmatprep.subr.mxu0 %v1376
      %1416 = vmatpush1.msra.mxu0 %v1375
      %1417 = vmatprep.subr.mxu0 %v1378
      %1418 = vmatpush1.msra.mxu0 %v1377
      %1419 = vmatprep.subr.mxu0 %v1380
      %1420 = vmatpush1.msra.mxu0 %v1379
      %1421 = vmatprep.subr.mxu0 %v1382
      %1422 = vmatpush1.msra.mxu0 %v1381
      %1423 = vmatprep.subr.mxu0 %v1384
      %1424 = vmatpush1.msra.mxu0 %v1383
      %1425 = vmatprep.subr.mxu0 %v1386
      %1426 = vmatpush1.msra.mxu0 %v1385
      %1427 = vmatprep.subr.mxu0 %v1388
      %1428 = vmatpush1.msra.mxu0 %v1387
      %1429 = vmatprep.subr.mxu0 %v1390
      %1430 = vmatpush1.msra.mxu0 %v1389
      %1431 = vmatprep.subr.mxu0 %v1392
      %1432 = vmatpush1.msra.mxu0 %v1391
      %1433 = vmatprep.subr.mxu0 %v1394
      %1434 = vmatpush1.msra.mxu0 %v1393
      %1435 = vmatprep.subr.mxu0 %v1396
      %1436 = vmatpush1.msra.mxu0 %v1395
      %1437 = vmatprep.subr.mxu0 %v1398
      %1438 = vmatpush1.msra.mxu0 %v1397
      %1439 = vmatprep.subr.mxu0 %v1400
      %1440 = vmatpush1.msra.mxu0 %v1399
      %1441 = vmatprep.subr.mxu0 %v1402
      %1442 = vmatpush1.msra.mxu0 %v1401
      %1443 = vmatprep.subr.mxu0 %v1404
      %1444 = vmatpush1.msra.mxu0 %v1403
      %1445 = vmatprep.subr.mxu0 0.0
      %1446 = vmatpush1.msra.mxu0 0.0
      %1447 = vmatprep.subr.mxu0 0.0
      %1448 = vmatpush1.msra.mxu0 0.0
      %1449 = vmatprep.subr.mxu0 0.0
      %1450 = vmatpush1.msra.mxu0 0.0
      %1451 = vmatprep.subr.mxu0 0.0
      %1452 = vmatpush1.msra.mxu0 0.0
      %1453 = vmatprep.subr.mxu0 0.0
      %1454 = vmatpush1.msra.mxu0 0.0
      %1455 = vmatprep.subr.mxu0 0.0
      %1456 = vmatpush1.msra.mxu0 0.0
      %1457 = vmatprep.subr.mxu0 0.0
      %1458 = vmatpush1.msra.mxu0 0.0
      %1459 = vmatprep.subr.mxu0 0.0
      %1460 = vmatpush1.msra.mxu0 0.0
      %1461 = vmatprep.subr.mxu0 0.0
      %1462 = vmatpush1.msra.mxu0 0.0
      %1463 = vmatprep.subr.mxu0 0.0
      %1464 = vmatpush1.msra.mxu0 0.0
      %1465 = vmatprep.subr.mxu0 0.0
      %1466 = vmatpush1.msra.mxu0 0.0
      %1467 = vmatprep.subr.mxu0 0.0
      %1468 = vmatpush1.msra.mxu0 0.0
      %1469 = vmatprep.subr.mxu0 0.0
      %1470 = vmatpush1.msra.mxu0 0.0
      %1471 = vmatprep.subr.mxu0 0.0
      %1472 = vmatpush1.msra.mxu0 0.0
      %1473 = vmatprep.subr.mxu0 0.0
      %1474 = vmatpush1.msra.mxu0 0.0
      %1475 = vmatprep.subr.mxu0 0.0
      %1476 = vmatpush1.msra.mxu0 0.0
      %1477 = vmatprep.mubr.f32.mxu0 0.0
      %1478 = vmatmul.mubr.f32.gmra.mrb[0].mxu0 %v897
      %v1479 = vpop.f32.mrb[0].mxu0
      %v1480 = vadd.f32 0.0, %v1479
      %v1481 = vpop.f32.mrb[0].mxu0
      %v1482 = vadd.f32 0.0, %v1481
      %1483 = vmatprep.mubr.f32.mxu0 0.0
      %1484 = vmatmul.mubr.f32.gmra.mrb[0].mxu0 %v902
      %v1485 = vpop.f32.mrb[0].mxu0
      %v1486 = vadd.f32 0.0, %v1485
      %v1487 = vpop.f32.mrb[0].mxu0
      %v1488 = vadd.f32 0.0, %v1487
      %1489 = vmatprep.mubr.f32.mxu0 0.0
      %1490 = vmatmul.mubr.f32.gmra.mrb[0].mxu0 %v907
      %v1491 = vpop.f32.mrb[0].mxu0
      %v1492 = vadd.f32 0.0, %v1491
      %v1493 = vpop.f32.mrb[0].mxu0
      %v1494 = vadd.f32 0.0, %v1493
      %1495 = vmatprep.mubr.f32.mxu0 0.0
      %1496 = vmatmul.mubr.f32.gmra.mrb[0].mxu0 %v912
      %v1497 = vpop.f32.mrb[0].mxu0
      %v1498 = vadd.f32 0.0, %v1497
      %v1499 = vpop.f32.mrb[0].mxu0
      %v1500 = vadd.f32 0.0, %v1499
      %1501 = vdwg.mxu0
      %v1502 = vadd.f32 %v1405, %v1480
      %v1503 = vadd.f32 %v1406, %v1482
      %v1504 = vadd.f32 %v1407, %v1486
      %v1505 = vadd.f32 %v1408, %v1488
      %v1506 = vadd.f32 %v1409, %v1492
      %v1507 = vadd.f32 %v1410, %v1494
      %v1508 = vadd.f32 %v1411, %v1498
      %v1509 = vadd.f32 %v1412, %v1500
      %1510 = vst [vmem:[%s290] sm:$0xff] %v1502
      %1511 = vst [vmem:[%s290 + $0x8] sm:$0xff] %v1503
      %1512 = vst [vmem:[%s290 + $0x10] sm:$0xff] %v1504
      %1513 = vst [vmem:[%s290 + $0x18] sm:$0xff] %v1505
      %1514 = vst [vmem:[%s290 + $0x20] sm:$0xff] %v1506
      %1515 = vst [vmem:[%s290 + $0x28] sm:$0xff] %v1507
      %1516 = vst [vmem:[%s290 + $0x30] sm:$0xff] %v1508
      %1517 = vst [vmem:[%s290 + $0x38] sm:$0xff] %v1509
      %p1518 = scmp.lt.s32.totalorder %s22, 1
      %s1519 = scalar_select %p1518, %s22, 1
      %s1520 = smul.addr %s1519, 8
      %s1521 = smul.addr %s1520, 8
      %s1522 = scalar_lea.vmem %s7, %s1521
      // Predicated region
      $region53: #{attention_module.1} parent=47 // pred_check
        %p1523 = pneg %p200
      $region54: #{attention_module.1} parent=47 // pred_check_branch
        %1525 = sbr.rel (%p1523) target = $region56
      $region55: #{attention_module.1} parent=47 // pred_region
        _
      $region56: #{attention_module.1} parent=47 // pred_fallthru
        _
    $region48: #{attention_module.1} parent=5 // pred_fallthru
      _
    %p1526 = scmp.le.s32.totalorder 2, %s13
    // Predicated region
    $region57: #{attention_module.1} parent=5 // pred_check
      %p1527 = pneg %p1526
    $region58: #{attention_module.1} parent=5 // pred_check_branch
      %1529 = sbr.rel (%p1527) target = $region60
    $region59: #{attention_module.1} parent=5 // pred_region
      %s1530 = ssub.s32 %s13, 2
      // Predicated region
      $region61: #{attention_module.1} parent=59 // pred_check
        %p1531 = pneg %p206
      $region62: #{attention_module.1} parent=59 // pred_check_branch
        %1533 = sbr.rel (%p1531) target = $region64
      $region63: #{attention_module.1} parent=59 // pred_region
        %p1534 = scmp.lt.s32.totalorder %s24, 1
        %s1535 = scalar_select %p1534, %s24, 1
        %s1536 = smul.addr %s1535, 8
        %s1537 = smul.addr %s1536, 8
        %s1538 = scalar_lea.vmem %s7, %s1537
      $region64: #{attention_module.1} parent=59 // pred_fallthru
        _
    $region60: #{attention_module.1} parent=5 // pred_fallthru
      _
  $region6: #{attention_module.1} parent=0 // loop_footer
    %s17 = sadd.s32 1, %s13
  $region7: #{attention_module.1} parent=0 // loop_footer_branch
    %12 = sbr.rel target = $region3
  $region8: #{attention_module.1} parent=0 // loop_exit
    _

</llo_original>
